<compile_context>
chip_gen: v7x
topology: tpu7x:2x2x1
jax: 0.10.0
libtpu: 0.0.40
codegen_flags: <defaults>
</compile_context>

<pallas_src>
import functools

import jax
import jax.numpy as jnp
from jax.experimental import pallas as pl
from jax.experimental.pallas import tpu as pltpu

# ----------------------------- configuration -------------------------------
INPUT_DIM = 16     # vocab / feature dim of the FC output
HIDDEN_DIM = 32    # GRU hidden size
LATENT_DIM = 16    # latent z size (GRU input size)
SEQ_LEN = 8
BATCH = 2
HIDDEN_FACTOR = 1  # bidirectional = False


# ------------------------------- kernel ------------------------------------
def _decoder_kernel(z_ref,          # (B, L)
                    wi_ref,         # (L, 4H)  fused [W_ir|W_iz|W_in|0]
                    wh_ref,         # (H, 4H)  fused [W_hr|W_hz|W_hn|0]
                    b_ref,          # (1, 4H)  [b_r | b_z | b_in | b_hn]
                    wfc_ref,        # (H, D)
                    bfc_ref,        # (1, D)
                    out_ref,        # (B, S*D) lane-dense log-probs
                    *, seq_len, hidden_dim):
    S, H = seq_len, hidden_dim

    z = z_ref[...]                                            # (B, L)
    b_all = b_ref[...]                                        # (1, 4H)
    w_h = wh_ref[...]                                         # (H, 4H)
    w_fc = wfc_ref[...]                                       # (H, D)
    b_fc = bfc_ref[...]                                       # (1, D)

    # ---- loop-invariant work, hoisted (same z at every timestep) ----------
    # One fused input projection; r/z biases are pre-folded (b_ih + b_hh),
    # b_hn stays separate because n = tanh(x_n + r * (h@W_hn + b_hn)).
    xp = jnp.dot(z, wi_ref[...], preferred_element_type=jnp.float32)   # (B, 4H)
    x_r = xp[:, 0:H] + b_all[:, 0:H]
    x_u = xp[:, H:2 * H] + b_all[:, H:2 * H]
    x_n = xp[:, 2 * H:3 * H] + b_all[:, 2 * H:3 * H]
    b_hn = b_all[:, 3 * H:4 * H]

    def fc_logsoftmax(h):
        # Off the h->h critical path: overlaps with subsequent recurrence steps.
        logits = jnp.dot(h, w_fc, preferred_element_type=jnp.float32) + b_fc  # (B, D)
        m = jnp.max(logits, axis=-1, keepdims=True)
        lse = m + jnp.log(jnp.sum(jnp.exp(logits - m), axis=-1, keepdims=True))
        return logits - lse

    # ---- peeled step 0: h0 = 0, so no h->h matmul is needed ----------------
    u = jax.nn.sigmoid(x_u)
    r = jax.nn.sigmoid(x_r)
    n = jnp.tanh(x_n + r * b_hn)
    h = n - u * n                                             # (1-u)*n + u*0
    lp = [fc_logsoftmax(h)]

    # ---- serial GRU recurrence: one fused MXU op per step ------------------
    for _ in range(1, S):                                     # static unroll (S=8)
        hp = jnp.dot(h, w_h, preferred_element_type=jnp.float32)        # (B, 4H)
        u = jax.nn.sigmoid(x_u + hp[:, H:2 * H])
        r = jax.nn.sigmoid(x_r + hp[:, 0:H])
        n = jnp.tanh(x_n + r * (hp[:, 2 * H:3 * H] + b_hn))
        h = n + u * (h - n)                                   # (B, H)
        lp.append(fc_logsoftmax(h))

    # ---- single lane-dense (B, S*D) = (2, 128) store ------------------------
    out_ref[...] = jnp.concatenate(lp, axis=-1)


# --------------------------- parameter preparation ---------------------------
def prepare_decoder_params(params):
    """One-time transposes / gate fusion / bias folding (PyTorch gate order [r|z|n])."""
    H = HIDDEN_DIM
    wih, whh, bih, bhh, wfc, bfc = (
        params["w_ih"], params["w_hh"], params["b_ih"],
        params["b_hh"], params["w_fc"], params["b_fc"])

    # Fused, lane-dense (… , 4H) weights; the trailing H columns are zero padding
    # so the per-step matmul result lands as a full 128-lane vreg.
    w_i = jnp.concatenate([wih[0:H, :].T, wih[H:2 * H, :].T, wih[2 * H:3 * H, :].T],
                          axis=1)                                  # (L, 3H)
    w_i = jnp.pad(w_i, ((0, 0), (0, H)))                           # (L, 4H)
    w_h = jnp.concatenate([whh[0:H, :].T, whh[H:2 * H, :].T, whh[2 * H:3 * H, :].T],
                          axis=1)                                  # (H, 3H)
    w_h = jnp.pad(w_h, ((0, 0), (0, H)))                           # (H, 4H)

    b_all = jnp.concatenate([bih[0:H] + bhh[0:H],                  # folded r bias
                             bih[H:2 * H] + bhh[H:2 * H],          # folded z bias
                             bih[2 * H:3 * H],                     # b_ih[n]
                             bhh[2 * H:3 * H]]).reshape(1, 4 * H)  # b_hh[n]

    return {
        "w_i": jnp.asarray(w_i, jnp.float32),          # (L, 4H) = (16, 128)
        "w_h": jnp.asarray(w_h, jnp.float32),          # (H, 4H) = (32, 128)
        "b_all": jnp.asarray(b_all, jnp.float32),      # (1, 4H) = (1, 128)
        "w_fc": jnp.asarray(wfc.T, jnp.float32),       # (H, D)  = (32, 16)
        "b_fc": jnp.asarray(bfc.reshape(1, -1), jnp.float32),      # (1, D)
    }


# ------------------------------- wrapper ------------------------------------
@jax.jit
def decoder_forward(z, sorted_idx, prepared):
    """JAX/Pallas equivalent of Decoder.forward(z, sorted_idx, hidden=None)."""
    # output[reversed_idx] == RNN(z[reversed_idx]) because batch rows are
    # independent and h0 = 0.  NOTE: this assumption only holds for the
    # n_layers=1, unidirectional config used here.
    reversed_idx = jnp.argsort(sorted_idx)
    z_perm = z[reversed_idx]

    kernel = functools.partial(_decoder_kernel,
                               seq_len=SEQ_LEN, hidden_dim=HIDDEN_DIM)
    vmem = pl.BlockSpec(memory_space=pltpu.MemorySpace.VMEM)
    slab = pl.pallas_call(
        kernel,
        out_shape=jax.ShapeDtypeStruct((BATCH, SEQ_LEN * INPUT_DIM), jnp.float32),
        in_specs=[vmem] * 6,
        out_specs=vmem,
    )(z_perm, prepared["w_i"], prepared["w_h"], prepared["b_all"],
      prepared["w_fc"], prepared["b_fc"])
    return slab.reshape(BATCH, SEQ_LEN, INPUT_DIM)


# --------------------------- reference (pure JAX) ---------------------------
def decoder_reference(z, sorted_idx, params):
    wih, whh, bih, bhh, wfc, bfc = (
        params["w_ih"], params["w_hh"], params["b_ih"],
        params["b_hh"], params["w_fc"], params["b_fc"])
    H = HIDDEN_DIM
    reversed_idx = jnp.argsort(sorted_idx)

    def gru_seq(zrow):
        xp = zrow @ wih.T + bih

        def step(h, _):
            hp = h @ whh.T + bhh
            r = jax.nn.sigmoid(xp[0:H] + hp[0:H])
            u = jax.nn.sigmoid(xp[H:2 * H] + hp[H:2 * H])
            n = jnp.tanh(xp[2 * H:3 * H] + r * hp[2 * H:3 * H])
            h = (1.0 - u) * n + u * h
            return h, h

        _, hs = jax.lax.scan(step, jnp.zeros((H,), jnp.float32),
                             None, length=SEQ_LEN)
        return hs                                              # (S, H)

    output = jax.vmap(gru_seq)(z)                              # (B, S, H)
    output = output[reversed_idx]
    logits = output @ wfc.T + bfc                              # (B, S, D)
    return jax.nn.log_softmax(logits, axis=-1)


# --------------------------------- main --------------------------------------
def _init_params(key):
    """Deterministic init mimicking PyTorch's U(-1/sqrt(H), 1/sqrt(H))."""
    ks = jax.random.split(key, 6)
    bound = 1.0 / jnp.sqrt(jnp.float32(HIDDEN_DIM))
    u = lambda k, shape: jax.random.uniform(k, shape, jnp.float32, -bound, bound)
    return {
        "w_ih": u(ks[0], (3 * HIDDEN_DIM, LATENT_DIM)),
        "w_hh": u(ks[1], (3 * HIDDEN_DIM, HIDDEN_DIM)),
        "b_ih": u(ks[2], (3 * HIDDEN_DIM,)),
        "b_hh": u(ks[3], (3 * HIDDEN_DIM,)),
        "w_fc": u(ks[4], (INPUT_DIM, HIDDEN_DIM * HIDDEN_FACTOR)),
        "b_fc": u(ks[5], (INPUT_DIM,)),
    }


if __name__ == "__main__":
    root = jax.random.PRNGKey(0)
    kp, kz = jax.random.split(root)
    params = _init_params(kp)
    prepared = prepare_decoder_params(params)     # one-time weight prep

    z = jax.random.normal(kz, (BATCH, LATENT_DIM), jnp.float32)
    sorted_idx = jnp.array([1, 0], dtype=jnp.int32)   # example sort permutation
    # NOTE: the PyTorch forward accepts `hidden` but never uses it (h0 = zeros).

    log_prob = decoder_forward(z, sorted_idx, prepared)
    jax.block_until_ready(log_prob)

    ref = decoder_reference(z, sorted_idx, params)
    assert log_prob.shape == (BATCH, SEQ_LEN, INPUT_DIM)
    assert jnp.allclose(log_prob, ref, atol=2e-4, rtol=2e-4), "mismatch vs reference"
    # rows of exp(log_prob) must sum to 1
    assert jnp.allclose(jnp.sum(jnp.exp(log_prob), axis=-1), 1.0, atol=1e-4)

    print("KERNEL_OK")
</pallas_src>

<mosaic_0001>
module attributes {stable_mosaic.version = 11 : i64} {
  func.func @_decoder_kernel(%arg0: memref<2x16xf32, #tpu.memory_space<vmem>>, %arg1: memref<16x128xf32, #tpu.memory_space<vmem>>, %arg2: memref<32x128xf32, #tpu.memory_space<vmem>>, %arg3: memref<1x128xf32, #tpu.memory_space<vmem>>, %arg4: memref<32x16xf32, #tpu.memory_space<vmem>>, %arg5: memref<1x16xf32, #tpu.memory_space<vmem>>, %arg6: memref<2x128xf32, #tpu.memory_space<vmem>>) attributes {dimension_semantics = [], scalar_prefetch = 0 : i64, scratch_operands = 0 : i64, tpu.core_type = #tpu.core_type<tc>} {
    %c0 = arith.constant 0 : index
    %c0_0 = arith.constant 0 : index
    %0 = vector.load %arg0[%c0, %c0_0] : memref<2x16xf32, #tpu.memory_space<vmem>>, vector<2x16xf32>
    %c0_1 = arith.constant 0 : index
    %c0_2 = arith.constant 0 : index
    %1 = vector.load %arg3[%c0_1, %c0_2] : memref<1x128xf32, #tpu.memory_space<vmem>>, vector<1x128xf32>
    %c0_3 = arith.constant 0 : index
    %c0_4 = arith.constant 0 : index
    %2 = vector.load %arg2[%c0_3, %c0_4] : memref<32x128xf32, #tpu.memory_space<vmem>>, vector<32x128xf32>
    %c0_5 = arith.constant 0 : index
    %c0_6 = arith.constant 0 : index
    %3 = vector.load %arg4[%c0_5, %c0_6] : memref<32x16xf32, #tpu.memory_space<vmem>>, vector<32x16xf32>
    %c0_7 = arith.constant 0 : index
    %c0_8 = arith.constant 0 : index
    %4 = vector.load %arg5[%c0_7, %c0_8] : memref<1x16xf32, #tpu.memory_space<vmem>>, vector<1x16xf32>
    %c0_9 = arith.constant 0 : index
    %c0_10 = arith.constant 0 : index
    %5 = vector.load %arg1[%c0_9, %c0_10] : memref<16x128xf32, #tpu.memory_space<vmem>>, vector<16x128xf32>
    %cst = arith.constant dense<0.000000e+00> : vector<2x128xf32>
    %6 = tpu.matmul %0, %5, %cst {dimension_numbers = #tpu.dot_dimension_numbers<[1], [0], [0], [1], [0, 0, 1, 1], [], []>} : vector<2x16xf32>, vector<16x128xf32>, vector<2x128xf32> -> vector<2x128xf32>
    %7 = vector.extract_strided_slice %6 {offsets = [0, 0], sizes = [2, 32], strides = [1, 1]} : vector<2x128xf32> to vector<2x32xf32>
    %8 = vector.extract_strided_slice %1 {offsets = [0, 0], sizes = [1, 32], strides = [1, 1]} : vector<1x128xf32> to vector<1x32xf32>
    %9 = vector.broadcast %8 : vector<1x32xf32> to vector<2x32xf32>
    %10 = arith.addf %7, %9 : vector<2x32xf32>
    %11 = vector.extract_strided_slice %6 {offsets = [0, 32], sizes = [2, 32], strides = [1, 1]} : vector<2x128xf32> to vector<2x32xf32>
    %12 = vector.extract_strided_slice %1 {offsets = [0, 32], sizes = [1, 32], strides = [1, 1]} : vector<1x128xf32> to vector<1x32xf32>
    %13 = vector.broadcast %12 : vector<1x32xf32> to vector<2x32xf32>
    %14 = arith.addf %11, %13 : vector<2x32xf32>
    %15 = vector.extract_strided_slice %6 {offsets = [0, 64], sizes = [2, 32], strides = [1, 1]} : vector<2x128xf32> to vector<2x32xf32>
    %16 = vector.extract_strided_slice %1 {offsets = [0, 64], sizes = [1, 32], strides = [1, 1]} : vector<1x128xf32> to vector<1x32xf32>
    %17 = vector.broadcast %16 : vector<1x32xf32> to vector<2x32xf32>
    %18 = arith.addf %15, %17 : vector<2x32xf32>
    %19 = vector.extract_strided_slice %1 {offsets = [0, 96], sizes = [1, 32], strides = [1, 1]} : vector<1x128xf32> to vector<1x32xf32>
    %20 = arith.negf %14 : vector<2x32xf32>
    %21 = math.exp %20 : vector<2x32xf32>
    %cst_11 = arith.constant 1.000000e+00 : f32
    %22 = vector.broadcast %cst_11 : f32 to vector<2x32xf32>
    %23 = arith.addf %22, %21 : vector<2x32xf32>
    %24 = arith.divf %22, %23 : vector<2x32xf32>
    %25 = arith.negf %10 : vector<2x32xf32>
    %26 = math.exp %25 : vector<2x32xf32>
    %cst_12 = arith.constant 1.000000e+00 : f32
    %27 = vector.broadcast %cst_12 : f32 to vector<2x32xf32>
    %28 = arith.addf %27, %26 : vector<2x32xf32>
    %29 = arith.divf %27, %28 : vector<2x32xf32>
    %30 = vector.broadcast %19 : vector<1x32xf32> to vector<2x32xf32>
    %31 = arith.mulf %29, %30 : vector<2x32xf32>
    %32 = arith.addf %18, %31 : vector<2x32xf32>
    %33 = math.tanh %32 : vector<2x32xf32>
    %34 = arith.mulf %24, %33 : vector<2x32xf32>
    %35 = arith.subf %33, %34 : vector<2x32xf32>
    %cst_13 = arith.constant dense<0.000000e+00> : vector<2x16xf32>
    %36 = tpu.matmul %35, %3, %cst_13 {dimension_numbers = #tpu.dot_dimension_numbers<[1], [0], [0], [1], [0, 0, 1, 1], [], []>} : vector<2x32xf32>, vector<32x16xf32>, vector<2x16xf32> -> vector<2x16xf32>
    %37 = vector.broadcast %4 : vector<1x16xf32> to vector<2x16xf32>
    %38 = arith.addf %36, %37 : vector<2x16xf32>
    %cst_14 = arith.constant dense<0xFF800000> : vector<2xf32>
    %39 = vector.multi_reduction <maximumf>, %38, %cst_14 [1] : vector<2x16xf32> to vector<2xf32>
    %40 = vector.shape_cast %39 : vector<2xf32> to vector<2x1xf32>
    %41 = vector.broadcast %40 : vector<2x1xf32> to vector<2x16xf32>
    %42 = arith.subf %38, %41 : vector<2x16xf32>
    %43 = math.exp %42 : vector<2x16xf32>
    %cst_15 = arith.constant dense<0.000000e+00> : vector<2xf32>
    %44 = vector.multi_reduction <add>, %43, %cst_15 [1] : vector<2x16xf32> to vector<2xf32>
    %45 = vector.shape_cast %44 : vector<2xf32> to vector<2x1xf32>
    %46 = math.log %45 : vector<2x1xf32>
    %47 = arith.addf %40, %46 : vector<2x1xf32>
    %48 = vector.broadcast %47 : vector<2x1xf32> to vector<2x16xf32>
    %49 = arith.subf %38, %48 : vector<2x16xf32>
    %cst_16 = arith.constant dense<0.000000e+00> : vector<2x128xf32>
    %50 = tpu.matmul %35, %2, %cst_16 {dimension_numbers = #tpu.dot_dimension_numbers<[1], [0], [0], [1], [0, 0, 1, 1], [], []>} : vector<2x32xf32>, vector<32x128xf32>, vector<2x128xf32> -> vector<2x128xf32>
    %51 = vector.extract_strided_slice %50 {offsets = [0, 32], sizes = [2, 32], strides = [1, 1]} : vector<2x128xf32> to vector<2x32xf32>
    %52 = arith.addf %14, %51 : vector<2x32xf32>
    %53 = arith.negf %52 : vector<2x32xf32>
    %54 = math.exp %53 : vector<2x32xf32>
    %cst_17 = arith.constant 1.000000e+00 : f32
    %55 = vector.broadcast %cst_17 : f32 to vector<2x32xf32>
    %56 = arith.addf %55, %54 : vector<2x32xf32>
    %57 = arith.divf %55, %56 : vector<2x32xf32>
    %58 = vector.extract_strided_slice %50 {offsets = [0, 0], sizes = [2, 32], strides = [1, 1]} : vector<2x128xf32> to vector<2x32xf32>
    %59 = arith.addf %10, %58 : vector<2x32xf32>
    %60 = arith.negf %59 : vector<2x32xf32>
    %61 = math.exp %60 : vector<2x32xf32>
    %cst_18 = arith.constant 1.000000e+00 : f32
    %62 = vector.broadcast %cst_18 : f32 to vector<2x32xf32>
    %63 = arith.addf %62, %61 : vector<2x32xf32>
    %64 = arith.divf %62, %63 : vector<2x32xf32>
    %65 = vector.extract_strided_slice %50 {offsets = [0, 64], sizes = [2, 32], strides = [1, 1]} : vector<2x128xf32> to vector<2x32xf32>
    %66 = vector.broadcast %19 : vector<1x32xf32> to vector<2x32xf32>
    %67 = arith.addf %65, %66 : vector<2x32xf32>
    %68 = arith.mulf %64, %67 : vector<2x32xf32>
    %69 = arith.addf %18, %68 : vector<2x32xf32>
    %70 = math.tanh %69 : vector<2x32xf32>
    %71 = arith.subf %35, %70 : vector<2x32xf32>
    %72 = arith.mulf %57, %71 : vector<2x32xf32>
    %73 = arith.addf %70, %72 : vector<2x32xf32>
    %cst_19 = arith.constant dense<0.000000e+00> : vector<2x16xf32>
    %74 = tpu.matmul %73, %3, %cst_19 {dimension_numbers = #tpu.dot_dimension_numbers<[1], [0], [0], [1], [0, 0, 1, 1], [], []>} : vector<2x32xf32>, vector<32x16xf32>, vector<2x16xf32> -> vector<2x16xf32>
    %75 = vector.broadcast %4 : vector<1x16xf32> to vector<2x16xf32>
    %76 = arith.addf %74, %75 : vector<2x16xf32>
    %cst_20 = arith.constant dense<0xFF800000> : vector<2xf32>
    %77 = vector.multi_reduction <maximumf>, %76, %cst_20 [1] : vector<2x16xf32> to vector<2xf32>
    %78 = vector.shape_cast %77 : vector<2xf32> to vector<2x1xf32>
    %79 = vector.broadcast %78 : vector<2x1xf32> to vector<2x16xf32>
    %80 = arith.subf %76, %79 : vector<2x16xf32>
    %81 = math.exp %80 : vector<2x16xf32>
    %cst_21 = arith.constant dense<0.000000e+00> : vector<2xf32>
    %82 = vector.multi_reduction <add>, %81, %cst_21 [1] : vector<2x16xf32> to vector<2xf32>
    %83 = vector.shape_cast %82 : vector<2xf32> to vector<2x1xf32>
    %84 = math.log %83 : vector<2x1xf32>
    %85 = arith.addf %78, %84 : vector<2x1xf32>
    %86 = vector.broadcast %85 : vector<2x1xf32> to vector<2x16xf32>
    %87 = arith.subf %76, %86 : vector<2x16xf32>
    %cst_22 = arith.constant dense<0.000000e+00> : vector<2x128xf32>
    %88 = tpu.matmul %73, %2, %cst_22 {dimension_numbers = #tpu.dot_dimension_numbers<[1], [0], [0], [1], [0, 0, 1, 1], [], []>} : vector<2x32xf32>, vector<32x128xf32>, vector<2x128xf32> -> vector<2x128xf32>
    %89 = vector.extract_strided_slice %88 {offsets = [0, 32], sizes = [2, 32], strides = [1, 1]} : vector<2x128xf32> to vector<2x32xf32>
    %90 = arith.addf %14, %89 : vector<2x32xf32>
    %91 = arith.negf %90 : vector<2x32xf32>
    %92 = math.exp %91 : vector<2x32xf32>
    %cst_23 = arith.constant 1.000000e+00 : f32
    %93 = vector.broadcast %cst_23 : f32 to vector<2x32xf32>
    %94 = arith.addf %93, %92 : vector<2x32xf32>
    %95 = arith.divf %93, %94 : vector<2x32xf32>
    %96 = vector.extract_strided_slice %88 {offsets = [0, 0], sizes = [2, 32], strides = [1, 1]} : vector<2x128xf32> to vector<2x32xf32>
    %97 = arith.addf %10, %96 : vector<2x32xf32>
    %98 = arith.negf %97 : vector<2x32xf32>
    %99 = math.exp %98 : vector<2x32xf32>
    %cst_24 = arith.constant 1.000000e+00 : f32
    %100 = vector.broadcast %cst_24 : f32 to vector<2x32xf32>
    %101 = arith.addf %100, %99 : vector<2x32xf32>
    %102 = arith.divf %100, %101 : vector<2x32xf32>
    %103 = vector.extract_strided_slice %88 {offsets = [0, 64], sizes = [2, 32], strides = [1, 1]} : vector<2x128xf32> to vector<2x32xf32>
    %104 = vector.broadcast %19 : vector<1x32xf32> to vector<2x32xf32>
    %105 = arith.addf %103, %104 : vector<2x32xf32>
    %106 = arith.mulf %102, %105 : vector<2x32xf32>
    %107 = arith.addf %18, %106 : vector<2x32xf32>
    %108 = math.tanh %107 : vector<2x32xf32>
    %109 = arith.subf %73, %108 : vector<2x32xf32>
    %110 = arith.mulf %95, %109 : vector<2x32xf32>
    %111 = arith.addf %108, %110 : vector<2x32xf32>
    %cst_25 = arith.constant dense<0.000000e+00> : vector<2x16xf32>
    %112 = tpu.matmul %111, %3, %cst_25 {dimension_numbers = #tpu.dot_dimension_numbers<[1], [0], [0], [1], [0, 0, 1, 1], [], []>} : vector<2x32xf32>, vector<32x16xf32>, vector<2x16xf32> -> vector<2x16xf32>
    %113 = vector.broadcast %4 : vector<1x16xf32> to vector<2x16xf32>
    %114 = arith.addf %112, %113 : vector<2x16xf32>
    %cst_26 = arith.constant dense<0xFF800000> : vector<2xf32>
    %115 = vector.multi_reduction <maximumf>, %114, %cst_26 [1] : vector<2x16xf32> to vector<2xf32>
    %116 = vector.shape_cast %115 : vector<2xf32> to vector<2x1xf32>
    %117 = vector.broadcast %116 : vector<2x1xf32> to vector<2x16xf32>
    %118 = arith.subf %114, %117 : vector<2x16xf32>
    %119 = math.exp %118 : vector<2x16xf32>
    %cst_27 = arith.constant dense<0.000000e+00> : vector<2xf32>
    %120 = vector.multi_reduction <add>, %119, %cst_27 [1] : vector<2x16xf32> to vector<2xf32>
    %121 = vector.shape_cast %120 : vector<2xf32> to vector<2x1xf32>
    %122 = math.log %121 : vector<2x1xf32>
    %123 = arith.addf %116, %122 : vector<2x1xf32>
    %124 = vector.broadcast %123 : vector<2x1xf32> to vector<2x16xf32>
    %125 = arith.subf %114, %124 : vector<2x16xf32>
    %cst_28 = arith.constant dense<0.000000e+00> : vector<2x128xf32>
    %126 = tpu.matmul %111, %2, %cst_28 {dimension_numbers = #tpu.dot_dimension_numbers<[1], [0], [0], [1], [0, 0, 1, 1], [], []>} : vector<2x32xf32>, vector<32x128xf32>, vector<2x128xf32> -> vector<2x128xf32>
    %127 = vector.extract_strided_slice %126 {offsets = [0, 32], sizes = [2, 32], strides = [1, 1]} : vector<2x128xf32> to vector<2x32xf32>
    %128 = arith.addf %14, %127 : vector<2x32xf32>
    %129 = arith.negf %128 : vector<2x32xf32>
    %130 = math.exp %129 : vector<2x32xf32>
    %cst_29 = arith.constant 1.000000e+00 : f32
    %131 = vector.broadcast %cst_29 : f32 to vector<2x32xf32>
    %132 = arith.addf %131, %130 : vector<2x32xf32>
    %133 = arith.divf %131, %132 : vector<2x32xf32>
    %134 = vector.extract_strided_slice %126 {offsets = [0, 0], sizes = [2, 32], strides = [1, 1]} : vector<2x128xf32> to vector<2x32xf32>
    %135 = arith.addf %10, %134 : vector<2x32xf32>
    %136 = arith.negf %135 : vector<2x32xf32>
    %137 = math.exp %136 : vector<2x32xf32>
    %cst_30 = arith.constant 1.000000e+00 : f32
    %138 = vector.broadcast %cst_30 : f32 to vector<2x32xf32>
    %139 = arith.addf %138, %137 : vector<2x32xf32>
    %140 = arith.divf %138, %139 : vector<2x32xf32>
    %141 = vector.extract_strided_slice %126 {offsets = [0, 64], sizes = [2, 32], strides = [1, 1]} : vector<2x128xf32> to vector<2x32xf32>
    %142 = vector.broadcast %19 : vector<1x32xf32> to vector<2x32xf32>
    %143 = arith.addf %141, %142 : vector<2x32xf32>
    %144 = arith.mulf %140, %143 : vector<2x32xf32>
    %145 = arith.addf %18, %144 : vector<2x32xf32>
    %146 = math.tanh %145 : vector<2x32xf32>
    %147 = arith.subf %111, %146 : vector<2x32xf32>
    %148 = arith.mulf %133, %147 : vector<2x32xf32>
    %149 = arith.addf %146, %148 : vector<2x32xf32>
    %cst_31 = arith.constant dense<0.000000e+00> : vector<2x16xf32>
    %150 = tpu.matmul %149, %3, %cst_31 {dimension_numbers = #tpu.dot_dimension_numbers<[1], [0], [0], [1], [0, 0, 1, 1], [], []>} : vector<2x32xf32>, vector<32x16xf32>, vector<2x16xf32> -> vector<2x16xf32>
    %151 = vector.broadcast %4 : vector<1x16xf32> to vector<2x16xf32>
    %152 = arith.addf %150, %151 : vector<2x16xf32>
    %cst_32 = arith.constant dense<0xFF800000> : vector<2xf32>
    %153 = vector.multi_reduction <maximumf>, %152, %cst_32 [1] : vector<2x16xf32> to vector<2xf32>
    %154 = vector.shape_cast %153 : vector<2xf32> to vector<2x1xf32>
    %155 = vector.broadcast %154 : vector<2x1xf32> to vector<2x16xf32>
    %156 = arith.subf %152, %155 : vector<2x16xf32>
    %157 = math.exp %156 : vector<2x16xf32>
    %cst_33 = arith.constant dense<0.000000e+00> : vector<2xf32>
    %158 = vector.multi_reduction <add>, %157, %cst_33 [1] : vector<2x16xf32> to vector<2xf32>
    %159 = vector.shape_cast %158 : vector<2xf32> to vector<2x1xf32>
    %160 = math.log %159 : vector<2x1xf32>
    %161 = arith.addf %154, %160 : vector<2x1xf32>
    %162 = vector.broadcast %161 : vector<2x1xf32> to vector<2x16xf32>
    %163 = arith.subf %152, %162 : vector<2x16xf32>
    %cst_34 = arith.constant dense<0.000000e+00> : vector<2x128xf32>
    %164 = tpu.matmul %149, %2, %cst_34 {dimension_numbers = #tpu.dot_dimension_numbers<[1], [0], [0], [1], [0, 0, 1, 1], [], []>} : vector<2x32xf32>, vector<32x128xf32>, vector<2x128xf32> -> vector<2x128xf32>
    %165 = vector.extract_strided_slice %164 {offsets = [0, 32], sizes = [2, 32], strides = [1, 1]} : vector<2x128xf32> to vector<2x32xf32>
    %166 = arith.addf %14, %165 : vector<2x32xf32>
    %167 = arith.negf %166 : vector<2x32xf32>
    %168 = math.exp %167 : vector<2x32xf32>
    %cst_35 = arith.constant 1.000000e+00 : f32
    %169 = vector.broadcast %cst_35 : f32 to vector<2x32xf32>
    %170 = arith.addf %169, %168 : vector<2x32xf32>
    %171 = arith.divf %169, %170 : vector<2x32xf32>
    %172 = vector.extract_strided_slice %164 {offsets = [0, 0], sizes = [2, 32], strides = [1, 1]} : vector<2x128xf32> to vector<2x32xf32>
    %173 = arith.addf %10, %172 : vector<2x32xf32>
    %174 = arith.negf %173 : vector<2x32xf32>
    %175 = math.exp %174 : vector<2x32xf32>
    %cst_36 = arith.constant 1.000000e+00 : f32
    %176 = vector.broadcast %cst_36 : f32 to vector<2x32xf32>
    %177 = arith.addf %176, %175 : vector<2x32xf32>
    %178 = arith.divf %176, %177 : vector<2x32xf32>
    %179 = vector.extract_strided_slice %164 {offsets = [0, 64], sizes = [2, 32], strides = [1, 1]} : vector<2x128xf32> to vector<2x32xf32>
    %180 = vector.broadcast %19 : vector<1x32xf32> to vector<2x32xf32>
    %181 = arith.addf %179, %180 : vector<2x32xf32>
    %182 = arith.mulf %178, %181 : vector<2x32xf32>
    %183 = arith.addf %18, %182 : vector<2x32xf32>
    %184 = math.tanh %183 : vector<2x32xf32>
    %185 = arith.subf %149, %184 : vector<2x32xf32>
    %186 = arith.mulf %171, %185 : vector<2x32xf32>
    %187 = arith.addf %184, %186 : vector<2x32xf32>
    %cst_37 = arith.constant dense<0.000000e+00> : vector<2x16xf32>
    %188 = tpu.matmul %187, %3, %cst_37 {dimension_numbers = #tpu.dot_dimension_numbers<[1], [0], [0], [1], [0, 0, 1, 1], [], []>} : vector<2x32xf32>, vector<32x16xf32>, vector<2x16xf32> -> vector<2x16xf32>
    %189 = vector.broadcast %4 : vector<1x16xf32> to vector<2x16xf32>
    %190 = arith.addf %188, %189 : vector<2x16xf32>
    %cst_38 = arith.constant dense<0xFF800000> : vector<2xf32>
    %191 = vector.multi_reduction <maximumf>, %190, %cst_38 [1] : vector<2x16xf32> to vector<2xf32>
    %192 = vector.shape_cast %191 : vector<2xf32> to vector<2x1xf32>
    %193 = vector.broadcast %192 : vector<2x1xf32> to vector<2x16xf32>
    %194 = arith.subf %190, %193 : vector<2x16xf32>
    %195 = math.exp %194 : vector<2x16xf32>
    %cst_39 = arith.constant dense<0.000000e+00> : vector<2xf32>
    %196 = vector.multi_reduction <add>, %195, %cst_39 [1] : vector<2x16xf32> to vector<2xf32>
    %197 = vector.shape_cast %196 : vector<2xf32> to vector<2x1xf32>
    %198 = math.log %197 : vector<2x1xf32>
    %199 = arith.addf %192, %198 : vector<2x1xf32>
    %200 = vector.broadcast %199 : vector<2x1xf32> to vector<2x16xf32>
    %201 = arith.subf %190, %200 : vector<2x16xf32>
    %cst_40 = arith.constant dense<0.000000e+00> : vector<2x128xf32>
    %202 = tpu.matmul %187, %2, %cst_40 {dimension_numbers = #tpu.dot_dimension_numbers<[1], [0], [0], [1], [0, 0, 1, 1], [], []>} : vector<2x32xf32>, vector<32x128xf32>, vector<2x128xf32> -> vector<2x128xf32>
    %203 = vector.extract_strided_slice %202 {offsets = [0, 32], sizes = [2, 32], strides = [1, 1]} : vector<2x128xf32> to vector<2x32xf32>
    %204 = arith.addf %14, %203 : vector<2x32xf32>
    %205 = arith.negf %204 : vector<2x32xf32>
    %206 = math.exp %205 : vector<2x32xf32>
    %cst_41 = arith.constant 1.000000e+00 : f32
    %207 = vector.broadcast %cst_41 : f32 to vector<2x32xf32>
    %208 = arith.addf %207, %206 : vector<2x32xf32>
    %209 = arith.divf %207, %208 : vector<2x32xf32>
    %210 = vector.extract_strided_slice %202 {offsets = [0, 0], sizes = [2, 32], strides = [1, 1]} : vector<2x128xf32> to vector<2x32xf32>
    %211 = arith.addf %10, %210 : vector<2x32xf32>
    %212 = arith.negf %211 : vector<2x32xf32>
    %213 = math.exp %212 : vector<2x32xf32>
    %cst_42 = arith.constant 1.000000e+00 : f32
    %214 = vector.broadcast %cst_42 : f32 to vector<2x32xf32>
    %215 = arith.addf %214, %213 : vector<2x32xf32>
    %216 = arith.divf %214, %215 : vector<2x32xf32>
    %217 = vector.extract_strided_slice %202 {offsets = [0, 64], sizes = [2, 32], strides = [1, 1]} : vector<2x128xf32> to vector<2x32xf32>
    %218 = vector.broadcast %19 : vector<1x32xf32> to vector<2x32xf32>
    %219 = arith.addf %217, %218 : vector<2x32xf32>
    %220 = arith.mulf %216, %219 : vector<2x32xf32>
    %221 = arith.addf %18, %220 : vector<2x32xf32>
    %222 = math.tanh %221 : vector<2x32xf32>
    %223 = arith.subf %187, %222 : vector<2x32xf32>
    %224 = arith.mulf %209, %223 : vector<2x32xf32>
    %225 = arith.addf %222, %224 : vector<2x32xf32>
    %cst_43 = arith.constant dense<0.000000e+00> : vector<2x16xf32>
    %226 = tpu.matmul %225, %3, %cst_43 {dimension_numbers = #tpu.dot_dimension_numbers<[1], [0], [0], [1], [0, 0, 1, 1], [], []>} : vector<2x32xf32>, vector<32x16xf32>, vector<2x16xf32> -> vector<2x16xf32>
    %227 = vector.broadcast %4 : vector<1x16xf32> to vector<2x16xf32>
    %228 = arith.addf %226, %227 : vector<2x16xf32>
    %cst_44 = arith.constant dense<0xFF800000> : vector<2xf32>
    %229 = vector.multi_reduction <maximumf>, %228, %cst_44 [1] : vector<2x16xf32> to vector<2xf32>
    %230 = vector.shape_cast %229 : vector<2xf32> to vector<2x1xf32>
    %231 = vector.broadcast %230 : vector<2x1xf32> to vector<2x16xf32>
    %232 = arith.subf %228, %231 : vector<2x16xf32>
    %233 = math.exp %232 : vector<2x16xf32>
    %cst_45 = arith.constant dense<0.000000e+00> : vector<2xf32>
    %234 = vector.multi_reduction <add>, %233, %cst_45 [1] : vector<2x16xf32> to vector<2xf32>
    %235 = vector.shape_cast %234 : vector<2xf32> to vector<2x1xf32>
    %236 = math.log %235 : vector<2x1xf32>
    %237 = arith.addf %230, %236 : vector<2x1xf32>
    %238 = vector.broadcast %237 : vector<2x1xf32> to vector<2x16xf32>
    %239 = arith.subf %228, %238 : vector<2x16xf32>
    %cst_46 = arith.constant dense<0.000000e+00> : vector<2x128xf32>
    %240 = tpu.matmul %225, %2, %cst_46 {dimension_numbers = #tpu.dot_dimension_numbers<[1], [0], [0], [1], [0, 0, 1, 1], [], []>} : vector<2x32xf32>, vector<32x128xf32>, vector<2x128xf32> -> vector<2x128xf32>
    %241 = vector.extract_strided_slice %240 {offsets = [0, 32], sizes = [2, 32], strides = [1, 1]} : vector<2x128xf32> to vector<2x32xf32>
    %242 = arith.addf %14, %241 : vector<2x32xf32>
    %243 = arith.negf %242 : vector<2x32xf32>
    %244 = math.exp %243 : vector<2x32xf32>
    %cst_47 = arith.constant 1.000000e+00 : f32
    %245 = vector.broadcast %cst_47 : f32 to vector<2x32xf32>
    %246 = arith.addf %245, %244 : vector<2x32xf32>
    %247 = arith.divf %245, %246 : vector<2x32xf32>
    %248 = vector.extract_strided_slice %240 {offsets = [0, 0], sizes = [2, 32], strides = [1, 1]} : vector<2x128xf32> to vector<2x32xf32>
    %249 = arith.addf %10, %248 : vector<2x32xf32>
    %250 = arith.negf %249 : vector<2x32xf32>
    %251 = math.exp %250 : vector<2x32xf32>
    %cst_48 = arith.constant 1.000000e+00 : f32
    %252 = vector.broadcast %cst_48 : f32 to vector<2x32xf32>
    %253 = arith.addf %252, %251 : vector<2x32xf32>
    %254 = arith.divf %252, %253 : vector<2x32xf32>
    %255 = vector.extract_strided_slice %240 {offsets = [0, 64], sizes = [2, 32], strides = [1, 1]} : vector<2x128xf32> to vector<2x32xf32>
    %256 = vector.broadcast %19 : vector<1x32xf32> to vector<2x32xf32>
    %257 = arith.addf %255, %256 : vector<2x32xf32>
    %258 = arith.mulf %254, %257 : vector<2x32xf32>
    %259 = arith.addf %18, %258 : vector<2x32xf32>
    %260 = math.tanh %259 : vector<2x32xf32>
    %261 = arith.subf %225, %260 : vector<2x32xf32>
    %262 = arith.mulf %247, %261 : vector<2x32xf32>
    %263 = arith.addf %260, %262 : vector<2x32xf32>
    %cst_49 = arith.constant dense<0.000000e+00> : vector<2x16xf32>
    %264 = tpu.matmul %263, %3, %cst_49 {dimension_numbers = #tpu.dot_dimension_numbers<[1], [0], [0], [1], [0, 0, 1, 1], [], []>} : vector<2x32xf32>, vector<32x16xf32>, vector<2x16xf32> -> vector<2x16xf32>
    %265 = vector.broadcast %4 : vector<1x16xf32> to vector<2x16xf32>
    %266 = arith.addf %264, %265 : vector<2x16xf32>
    %cst_50 = arith.constant dense<0xFF800000> : vector<2xf32>
    %267 = vector.multi_reduction <maximumf>, %266, %cst_50 [1] : vector<2x16xf32> to vector<2xf32>
    %268 = vector.shape_cast %267 : vector<2xf32> to vector<2x1xf32>
    %269 = vector.broadcast %268 : vector<2x1xf32> to vector<2x16xf32>
    %270 = arith.subf %266, %269 : vector<2x16xf32>
    %271 = math.exp %270 : vector<2x16xf32>
    %cst_51 = arith.constant dense<0.000000e+00> : vector<2xf32>
    %272 = vector.multi_reduction <add>, %271, %cst_51 [1] : vector<2x16xf32> to vector<2xf32>
    %273 = vector.shape_cast %272 : vector<2xf32> to vector<2x1xf32>
    %274 = math.log %273 : vector<2x1xf32>
    %275 = arith.addf %268, %274 : vector<2x1xf32>
    %276 = vector.broadcast %275 : vector<2x1xf32> to vector<2x16xf32>
    %277 = arith.subf %266, %276 : vector<2x16xf32>
    %cst_52 = arith.constant dense<0.000000e+00> : vector<2x128xf32>
    %278 = tpu.matmul %263, %2, %cst_52 {dimension_numbers = #tpu.dot_dimension_numbers<[1], [0], [0], [1], [0, 0, 1, 1], [], []>} : vector<2x32xf32>, vector<32x128xf32>, vector<2x128xf32> -> vector<2x128xf32>
    %279 = vector.extract_strided_slice %278 {offsets = [0, 32], sizes = [2, 32], strides = [1, 1]} : vector<2x128xf32> to vector<2x32xf32>
    %280 = arith.addf %14, %279 : vector<2x32xf32>
    %281 = arith.negf %280 : vector<2x32xf32>
    %282 = math.exp %281 : vector<2x32xf32>
    %cst_53 = arith.constant 1.000000e+00 : f32
    %283 = vector.broadcast %cst_53 : f32 to vector<2x32xf32>
    %284 = arith.addf %283, %282 : vector<2x32xf32>
    %285 = arith.divf %283, %284 : vector<2x32xf32>
    %286 = vector.extract_strided_slice %278 {offsets = [0, 0], sizes = [2, 32], strides = [1, 1]} : vector<2x128xf32> to vector<2x32xf32>
    %287 = arith.addf %10, %286 : vector<2x32xf32>
    %288 = arith.negf %287 : vector<2x32xf32>
    %289 = math.exp %288 : vector<2x32xf32>
    %cst_54 = arith.constant 1.000000e+00 : f32
    %290 = vector.broadcast %cst_54 : f32 to vector<2x32xf32>
    %291 = arith.addf %290, %289 : vector<2x32xf32>
    %292 = arith.divf %290, %291 : vector<2x32xf32>
    %293 = vector.extract_strided_slice %278 {offsets = [0, 64], sizes = [2, 32], strides = [1, 1]} : vector<2x128xf32> to vector<2x32xf32>
    %294 = vector.broadcast %19 : vector<1x32xf32> to vector<2x32xf32>
    %295 = arith.addf %293, %294 : vector<2x32xf32>
    %296 = arith.mulf %292, %295 : vector<2x32xf32>
    %297 = arith.addf %18, %296 : vector<2x32xf32>
    %298 = math.tanh %297 : vector<2x32xf32>
    %299 = arith.subf %263, %298 : vector<2x32xf32>
    %300 = arith.mulf %285, %299 : vector<2x32xf32>
    %301 = arith.addf %298, %300 : vector<2x32xf32>
    %cst_55 = arith.constant dense<0.000000e+00> : vector<2x16xf32>
    %302 = tpu.matmul %301, %3, %cst_55 {dimension_numbers = #tpu.dot_dimension_numbers<[1], [0], [0], [1], [0, 0, 1, 1], [], []>} : vector<2x32xf32>, vector<32x16xf32>, vector<2x16xf32> -> vector<2x16xf32>
    %303 = vector.broadcast %4 : vector<1x16xf32> to vector<2x16xf32>
    %304 = arith.addf %302, %303 : vector<2x16xf32>
    %cst_56 = arith.constant dense<0xFF800000> : vector<2xf32>
    %305 = vector.multi_reduction <maximumf>, %304, %cst_56 [1] : vector<2x16xf32> to vector<2xf32>
    %306 = vector.shape_cast %305 : vector<2xf32> to vector<2x1xf32>
    %307 = vector.broadcast %306 : vector<2x1xf32> to vector<2x16xf32>
    %308 = arith.subf %304, %307 : vector<2x16xf32>
    %309 = math.exp %308 : vector<2x16xf32>
    %cst_57 = arith.constant dense<0.000000e+00> : vector<2xf32>
    %310 = vector.multi_reduction <add>, %309, %cst_57 [1] : vector<2x16xf32> to vector<2xf32>
    %311 = vector.shape_cast %310 : vector<2xf32> to vector<2x1xf32>
    %312 = math.log %311 : vector<2x1xf32>
    %313 = arith.addf %306, %312 : vector<2x1xf32>
    %314 = vector.broadcast %313 : vector<2x1xf32> to vector<2x16xf32>
    %315 = arith.subf %304, %314 : vector<2x16xf32>
    %316 = tpu.concatenate %49, %87, %125, %163, %201, %239, %277, %315 in 1 : vector<2x16xf32>, vector<2x16xf32>, vector<2x16xf32>, vector<2x16xf32>, vector<2x16xf32>, vector<2x16xf32>, vector<2x16xf32>, vector<2x16xf32> -> vector<2x128xf32>
    %c0_58 = arith.constant 0 : index
    %c0_59 = arith.constant 0 : index
    %317 = vector.load %arg6[%c0_58, %c0_59] : memref<2x128xf32, #tpu.memory_space<vmem>>, vector<2x128xf32>
    tpu.vector_store %arg6[%c0_58, %c0_59], %316 {strides = array<i32>} : memref<2x128xf32, #tpu.memory_space<vmem>>, vector<2x128xf32>,
    return
  }
}

</mosaic_0001>

<llo_original>
// kernel: decoder_forward.1
$region0: #{decoder_forward.1}
  #allocation0 [shape = 'u32[]', space=smem, size = 0x4, offset = 0x4, fixed_abs, tag = 'smem constant byte address 0x4 - core index']
  #allocation1 [shape = 'u32[144,128]{1,0:T(1,128)}', space=vmem, size = 0x12000, scoped, tag = 'internal scratch']
  %s0 = inlined_call_operand.vmem [shape: f32[2,16], index: 0, kind: input, shape index: {}]
  %s1 = inlined_call_operand.vmem [shape: f32[16,128], index: 1, kind: input, shape index: {}]
  %s2 = inlined_call_operand.vmem [shape: f32[32,128], index: 2, kind: input, shape index: {}]
  %s3 = inlined_call_operand.vmem [shape: f32[1,128], index: 3, kind: input, shape index: {}]
  %s4 = inlined_call_operand.vmem [shape: f32[32,16], index: 4, kind: input, shape index: {}]
  %s5 = inlined_call_operand.vmem [shape: f32[1,16], index: 5, kind: input, shape index: {}]
  %s6 = inlined_call_operand.vmem [shape: f32[2,128], index: 6, kind: output, shape index: {}]
  %s7 = sld [smem:[#allocation0]]
  $region34: #{decoder_forward.1} parent=0
    _
  %s9 = ssub.s32 1, %s7
  %s10 = scalar_select 0, %s9, %s7
  // Predicated region
  $region2: #{decoder_forward.1} parent=0 // pred_check
    _
  $region3: #{decoder_forward.1} parent=0 // pred_check_branch
    %12 = sbr.rel (0) target = $region5
  $region4: #{decoder_forward.1} parent=0 // pred_region
    _
  $region5: #{decoder_forward.1} parent=0 // pred_fallthru
    _
  // Predicated region
  $region6: #{decoder_forward.1} parent=0 // pred_check
    _
  $region7: #{decoder_forward.1} parent=0 // pred_check_branch
    %14 = sbr.rel (0) target = $region9
  $region8: #{decoder_forward.1} parent=0 // pred_region
    _
  $region9: #{decoder_forward.1} parent=0 // pred_fallthru
    _
  // Predicated region
  $region10: #{decoder_forward.1} parent=0 // pred_check
    _
  $region11: #{decoder_forward.1} parent=0 // pred_check_branch
    %16 = sbr.rel (0) target = $region13
  $region12: #{decoder_forward.1} parent=0 // pred_region
    _
  $region13: #{decoder_forward.1} parent=0 // pred_fallthru
    _
  // Predicated region
  $region14: #{decoder_forward.1} parent=0 // pred_check
    _
  $region15: #{decoder_forward.1} parent=0 // pred_check_branch
    %18 = sbr.rel (0) target = $region17
  $region16: #{decoder_forward.1} parent=0 // pred_region
    _
  $region17: #{decoder_forward.1} parent=0 // pred_fallthru
    _
  // Predicated region
  $region18: #{decoder_forward.1} parent=0 // pred_check
    _
  $region19: #{decoder_forward.1} parent=0 // pred_check_branch
    %20 = sbr.rel (0) target = $region21
  $region20: #{decoder_forward.1} parent=0 // pred_region
    _
  $region21: #{decoder_forward.1} parent=0 // pred_fallthru
    _
  // Predicated region
  $region22: #{decoder_forward.1} parent=0 // pred_check
    _
  $region23: #{decoder_forward.1} parent=0 // pred_check_branch
    %22 = sbr.rel (0) target = $region25
  $region24: #{decoder_forward.1} parent=0 // pred_region
    _
  $region25: #{decoder_forward.1} parent=0 // pred_fallthru
    _
  %v23 = vld [vmem:[%s0] sm:$0x3]
  %v24 = vld [vmem:[%s3] sm:$0x1]
  %v25 = vld [vmem:[%s2] sm:$0xff]
  %v26 = vld [vmem:[%s2 + $0x8] sm:$0xff]
  %v27 = vld [vmem:[%s2 + $0x10] sm:$0xff]
  %v28 = vld [vmem:[%s2 + $0x18] sm:$0xff]
  %v29 = vld [vmem:[%s4] sm:$0xff]
  %v30 = vld [vmem:[%s4 + $0x8] sm:$0xff]
  %v31 = vld [vmem:[%s4 + $0x10] sm:$0xff]
  %v32 = vld [vmem:[%s4 + $0x18] sm:$0xff]
  %v33 = vld [vmem:[%s5] sm:$0x1]
  %v34 = vld [vmem:[%s1] sm:$0xff]
  %v35 = vld [vmem:[%s1 + $0x8] sm:$0xff]
  %vm36 = vcmask 130048
  %v38 = vsel %vm36, %v23, 0
  %40 = vmatprep.subr.mxu0 0.0
  %41 = vmatpush1.msra.mxu0 %v34
  %42 = vmatprep.subr.mxu0 0.0
  %43 = vmatpush1.msra.mxu0 %v35
  %44 = vmatprep.subr.mxu0 0.0
  %45 = vmatpush1.msra.mxu0 0.0
  %46 = vmatprep.subr.mxu0 0.0
  %47 = vmatpush1.msra.mxu0 0.0
  %48 = vmatprep.subr.mxu0 0.0
  %49 = vmatpush1.msra.mxu0 0.0
  %50 = vmatprep.subr.mxu0 0.0
  %51 = vmatpush1.msra.mxu0 0.0
  %52 = vmatprep.subr.mxu0 0.0
  %53 = vmatpush1.msra.mxu0 0.0
  %54 = vmatprep.subr.mxu0 0.0
  %55 = vmatpush1.msra.mxu0 0.0
  %56 = vmatprep.subr.mxu0 0.0
  %57 = vmatpush1.msra.mxu0 0.0
  %58 = vmatprep.subr.mxu0 0.0
  %59 = vmatpush1.msra.mxu0 0.0
  %60 = vmatprep.subr.mxu0 0.0
  %61 = vmatpush1.msra.mxu0 0.0
  %62 = vmatprep.subr.mxu0 0.0
  %63 = vmatpush1.msra.mxu0 0.0
  %64 = vmatprep.subr.mxu0 0.0
  %65 = vmatpush1.msra.mxu0 0.0
  %66 = vmatprep.subr.mxu0 0.0
  %67 = vmatpush1.msra.mxu0 0.0
  %68 = vmatprep.subr.mxu0 0.0
  %69 = vmatpush1.msra.mxu0 0.0
  %70 = vmatprep.subr.mxu0 0.0
  %71 = vmatpush1.msra.mxu0 0.0
  %72 = vmatprep.subr.mxu0 0.0
  %73 = vmatpush1.msra.mxu0 0.0
  %74 = vmatprep.subr.mxu0 0.0
  %75 = vmatpush1.msra.mxu0 0.0
  %76 = vmatprep.subr.mxu0 0.0
  %77 = vmatpush1.msra.mxu0 0.0
  %78 = vmatprep.subr.mxu0 0.0
  %79 = vmatpush1.msra.mxu0 0.0
  %80 = vmatprep.subr.mxu0 0.0
  %81 = vmatpush1.msra.mxu0 0.0
  %82 = vmatprep.subr.mxu0 0.0
  %83 = vmatpush1.msra.mxu0 0.0
  %84 = vmatprep.subr.mxu0 0.0
  %85 = vmatpush1.msra.mxu0 0.0
  %86 = vmatprep.subr.mxu0 0.0
  %87 = vmatpush1.msra.mxu0 0.0
  %88 = vmatprep.subr.mxu0 0.0
  %89 = vmatpush1.msra.mxu0 0.0
  %90 = vmatprep.subr.mxu0 0.0
  %91 = vmatpush1.msra.mxu0 0.0
  %92 = vmatprep.subr.mxu0 0.0
  %93 = vmatpush1.msra.mxu0 0.0
  %94 = vmatprep.subr.mxu0 0.0
  %95 = vmatpush1.msra.mxu0 0.0
  %96 = vmatprep.subr.mxu0 0.0
  %97 = vmatpush1.msra.mxu0 0.0
  %98 = vmatprep.subr.mxu0 0.0
  %99 = vmatpush1.msra.mxu0 0.0
  %100 = vmatprep.subr.mxu0 0.0
  %101 = vmatpush1.msra.mxu0 0.0
  %102 = vmatprep.subr.mxu0 0.0
  %103 = vmatpush1.msra.mxu0 0.0
  %104 = vmatprep.mubr.f32.mxu0 0.0
  %105 = vmatmul.mubr.f32.gmra.mrb[0].mxu0 %v38
  %v106 = vpop.f32.mrb[0].mxu0
  %v107 = vadd.f32 0.0, %v106
  %v108 = vpop.f32.mrb[0].mxu0
  %109 = vdwg.mxu0
  %v111 = vlaneseq
  %v112 = vshrl.u32 %v111, 7
  %v113 = vsub.s32 0, %v112
  %v114 = vrot.slane %v24, %v113
  %v116 = vadd.f32 %v107, %v114
  %v117 = vxor.u32 %v116, 2147483648
  %v118 = vmul.f32 %v117, 1.442695
  %v119 = vpow.pop %v118
  %v120 = vadd.f32 %v119, 1.0
  %v121 = vrcp.pop %v120
  %v122 = vmul.f32 1.0, %v121
  %123 = vrot.lane.b32.xlu0 %v114, 32
  %v124 = vpop.permute.xlu0 %123
  %v126 = vmul.f32 %v122, %v124
  %128 = vrot.lane.b32.xlu0 %v126, 64
  %v129 = vpop.permute.xlu0 %128
  %v131 = vadd.f32 %v116, %v129
  %v132 = vtanh.pop %v131
  %134 = vrot.lane.b32.xlu0 %v132, 96
  %v135 = vpop.permute.xlu0 %134
  %v137 = vmul.f32 %v122, %v135
  %139 = vrot.lane.b32.xlu0 %v137, 32
  %v140 = vpop.permute.xlu0 %139
  %v142 = vsub.f32 %v132, %v140
  %v144 = vlaneseq
  %v145 = vshrl.u32 %v144, 7
  %v146 = vsub.s32 0, %v145
  %v147 = vrot.slane %v33, %v146
  %150 = vrot.lane.b32.xlu0 %v142, 64
  %v151 = vpop.permute.xlu0 %150
  %vm152 = vcmask 261120
  %v153 = vsel %vm152, %v151, 0
  %155 = vmatprep.subr.mxu0 0.0
  %156 = vmatpush1.msra.mxu0 %v29
  %157 = vmatprep.subr.mxu0 0.0
  %158 = vmatpush1.msra.mxu0 %v30
  %159 = vmatprep.subr.mxu0 0.0
  %160 = vmatpush1.msra.mxu0 %v31
  %161 = vmatprep.subr.mxu0 0.0
  %162 = vmatpush1.msra.mxu0 %v32
  %163 = vmatprep.subr.mxu0 0.0
  %164 = vmatpush1.msra.mxu0 0.0
  %165 = vmatprep.subr.mxu0 0.0
  %166 = vmatpush1.msra.mxu0 0.0
  %167 = vmatprep.subr.mxu0 0.0
  %168 = vmatpush1.msra.mxu0 0.0
  %169 = vmatprep.subr.mxu0 0.0
  %170 = vmatpush1.msra.mxu0 0.0
  %171 = vmatprep.subr.mxu0 0.0
  %172 = vmatpush1.msra.mxu0 0.0
  %173 = vmatprep.subr.mxu0 0.0
  %174 = vmatpush1.msra.mxu0 0.0
  %175 = vmatprep.subr.mxu0 0.0
  %176 = vmatpush1.msra.mxu0 0.0
  %177 = vmatprep.subr.mxu0 0.0
  %178 = vmatpush1.msra.mxu0 0.0
  %179 = vmatprep.subr.mxu0 0.0
  %180 = vmatpush1.msra.mxu0 0.0
  %181 = vmatprep.subr.mxu0 0.0
  %182 = vmatpush1.msra.mxu0 0.0
  %183 = vmatprep.subr.mxu0 0.0
  %184 = vmatpush1.msra.mxu0 0.0
  %185 = vmatprep.subr.mxu0 0.0
  %186 = vmatpush1.msra.mxu0 0.0
  %187 = vmatprep.subr.mxu0 0.0
  %188 = vmatpush1.msra.mxu0 0.0
  %189 = vmatprep.subr.mxu0 0.0
  %190 = vmatpush1.msra.mxu0 0.0
  %191 = vmatprep.subr.mxu0 0.0
  %192 = vmatpush1.msra.mxu0 0.0
  %193 = vmatprep.subr.mxu0 0.0
  %194 = vmatpush1.msra.mxu0 0.0
  %195 = vmatprep.subr.mxu0 0.0
  %196 = vmatpush1.msra.mxu0 0.0
  %197 = vmatprep.subr.mxu0 0.0
  %198 = vmatpush1.msra.mxu0 0.0
  %199 = vmatprep.subr.mxu0 0.0
  %200 = vmatpush1.msra.mxu0 0.0
  %201 = vmatprep.subr.mxu0 0.0
  %202 = vmatpush1.msra.mxu0 0.0
  %203 = vmatprep.subr.mxu0 0.0
  %204 = vmatpush1.msra.mxu0 0.0
  %205 = vmatprep.subr.mxu0 0.0
  %206 = vmatpush1.msra.mxu0 0.0
  %207 = vmatprep.subr.mxu0 0.0
  %208 = vmatpush1.msra.mxu0 0.0
  %209 = vmatprep.subr.mxu0 0.0
  %210 = vmatpush1.msra.mxu0 0.0
  %211 = vmatprep.subr.mxu0 0.0
  %212 = vmatpush1.msra.mxu0 0.0
  %213 = vmatprep.subr.mxu0 0.0
  %214 = vmatpush1.msra.mxu0 0.0
  %215 = vmatprep.subr.mxu0 0.0
  %216 = vmatpush1.msra.mxu0 0.0
  %217 = vmatprep.subr.mxu0 0.0
  %218 = vmatpush1.msra.mxu0 0.0
  %219 = vmatprep.mubr.f32.mxu0 0.0
  %220 = vmatmul.mubr.f32.gmra.mrb[0].mxu0 %v153
  %v221 = vpop.f32.mrb[0].mxu0
  %v222 = vadd.f32 %v147, %v221
  %v223 = vpop.f32.mrb[0].mxu0
  %224 = vdwg.mxu0
  %vm225 = vcmask 123904
  %v226 = vsel %vm225, %v222, -inf
  %227 = vmax.xlane.f32.xlu0 %v226
  %v228 = vpop.xlane.xlu0 %227
  %v229 = vsub.f32 %v222, %v228
  %v230 = vmul.f32 %v229, 1.442695
  %v231 = vpow.pop %v230
  %v232 = vsel %vm225, %v231, 0.0
  %233 = vadd.xlane.f32.xlu0 %v232
  %v234 = vpop.xlane.xlu0 %233
  %v235 = vlog2.pop %v234
  %v236 = vmul.f32 %v235, 0.6931472
  %v237 = vadd.f32 %v228, %v236
  %v238 = vsub.f32 %v222, %v237
  %239 = vmatprep.subr.mxu0 0.0
  %240 = vmatpush1.msra.mxu0 %v25
  %241 = vmatprep.subr.mxu0 0.0
  %242 = vmatpush1.msra.mxu0 %v26
  %243 = vmatprep.subr.mxu0 0.0
  %244 = vmatpush1.msra.mxu0 %v27
  %245 = vmatprep.subr.mxu0 0.0
  %246 = vmatpush1.msra.mxu0 %v28
  %247 = vmatprep.subr.mxu0 0.0
  %248 = vmatpush1.msra.mxu0 0.0
  %249 = vmatprep.subr.mxu0 0.0
  %250 = vmatpush1.msra.mxu0 0.0
  %251 = vmatprep.subr.mxu0 0.0
  %252 = vmatpush1.msra.mxu0 0.0
  %253 = vmatprep.subr.mxu0 0.0
  %254 = vmatpush1.msra.mxu0 0.0
  %255 = vmatprep.subr.mxu0 0.0
  %256 = vmatpush1.msra.mxu0 0.0
  %257 = vmatprep.subr.mxu0 0.0
  %258 = vmatpush1.msra.mxu0 0.0
  %259 = vmatprep.subr.mxu0 0.0
  %260 = vmatpush1.msra.mxu0 0.0
  %261 = vmatprep.subr.mxu0 0.0
  %262 = vmatpush1.msra.mxu0 0.0
  %263 = vmatprep.subr.mxu0 0.0
  %264 = vmatpush1.msra.mxu0 0.0
  %265 = vmatprep.subr.mxu0 0.0
  %266 = vmatpush1.msra.mxu0 0.0
  %267 = vmatprep.subr.mxu0 0.0
  %268 = vmatpush1.msra.mxu0 0.0
  %269 = vmatprep.subr.mxu0 0.0
  %270 = vmatpush1.msra.mxu0 0.0
  %271 = vmatprep.subr.mxu0 0.0
  %272 = vmatpush1.msra.mxu0 0.0
  %273 = vmatprep.subr.mxu0 0.0
  %274 = vmatpush1.msra.mxu0 0.0
  %275 = vmatprep.subr.mxu0 0.0
  %276 = vmatpush1.msra.mxu0 0.0
  %277 = vmatprep.subr.mxu0 0.0
  %278 = vmatpush1.msra.mxu0 0.0
  %279 = vmatprep.subr.mxu0 0.0
  %280 = vmatpush1.msra.mxu0 0.0
  %281 = vmatprep.subr.mxu0 0.0
  %282 = vmatpush1.msra.mxu0 0.0
  %283 = vmatprep.subr.mxu0 0.0
  %284 = vmatpush1.msra.mxu0 0.0
  %285 = vmatprep.subr.mxu0 0.0
  %286 = vmatpush1.msra.mxu0 0.0
  %287 = vmatprep.subr.mxu0 0.0
  %288 = vmatpush1.msra.mxu0 0.0
  %289 = vmatprep.subr.mxu0 0.0
  %290 = vmatpush1.msra.mxu0 0.0
  %291 = vmatprep.subr.mxu0 0.0
  %292 = vmatpush1.msra.mxu0 0.0
  %293 = vmatprep.subr.mxu0 0.0
  %294 = vmatpush1.msra.mxu0 0.0
  %295 = vmatprep.subr.mxu0 0.0
  %296 = vmatpush1.msra.mxu0 0.0
  %297 = vmatprep.subr.mxu0 0.0
  %298 = vmatpush1.msra.mxu0 0.0
  %299 = vmatprep.subr.mxu0 0.0
  %300 = vmatpush1.msra.mxu0 0.0
  %301 = vmatprep.subr.mxu0 0.0
  %302 = vmatpush1.msra.mxu0 0.0
  %303 = vmatprep.mubr.f32.mxu0 0.0
  %304 = vmatmul.mubr.f32.gmra.mrb[0].mxu0 %v153
  %v305 = vpop.f32.mrb[0].mxu0
  %v306 = vadd.f32 0.0, %v305
  %v307 = vpop.f32.mrb[0].mxu0
  %308 = vdwg.mxu0
  %v309 = vadd.f32 %v116, %v306
  %v310 = vxor.u32 %v309, 2147483648
  %v311 = vmul.f32 %v310, 1.442695
  %v312 = vpow.pop %v311
  %v313 = vadd.f32 %v312, 1.0
  %v314 = vrcp.pop %v313
  %v315 = vmul.f32 1.0, %v314
  %316 = vrot.lane.b32.xlu0 %v114, 96
  %v317 = vpop.permute.xlu0 %316
  %v319 = vadd.f32 %v306, %v317
  %321 = vrot.lane.b32.xlu0 %v319, 64
  %v322 = vpop.permute.xlu0 %321
  %v324 = vmul.f32 %v315, %v322
  %326 = vrot.lane.b32.xlu0 %v324, 64
  %v327 = vpop.permute.xlu0 %326
  %v329 = vadd.f32 %v116, %v327
  %v330 = vtanh.pop %v329
  %v331 = vsub.f32 %v142, %v330
  %333 = vrot.lane.b32.xlu0 %v331, 96
  %v334 = vpop.permute.xlu0 %333
  %v336 = vmul.f32 %v315, %v334
  %338 = vrot.lane.b32.xlu0 %v336, 32
  %v339 = vpop.permute.xlu0 %338
  %v341 = vadd.f32 %v330, %v339
  %343 = vrot.lane.b32.xlu0 %v341, 64
  %v344 = vpop.permute.xlu0 %343
  %v345 = vsel %vm152, %v344, 0
  %347 = vmatprep.subr.mxu0 0.0
  %348 = vmatpush1.msra.mxu0 %v29
  %349 = vmatprep.subr.mxu0 0.0
  %350 = vmatpush1.msra.mxu0 %v30
  %351 = vmatprep.subr.mxu0 0.0
  %352 = vmatpush1.msra.mxu0 %v31
  %353 = vmatprep.subr.mxu0 0.0
  %354 = vmatpush1.msra.mxu0 %v32
  %355 = vmatprep.subr.mxu0 0.0
  %356 = vmatpush1.msra.mxu0 0.0
  %357 = vmatprep.subr.mxu0 0.0
  %358 = vmatpush1.msra.mxu0 0.0
  %359 = vmatprep.subr.mxu0 0.0
  %360 = vmatpush1.msra.mxu0 0.0
  %361 = vmatprep.subr.mxu0 0.0
  %362 = vmatpush1.msra.mxu0 0.0
  %363 = vmatprep.subr.mxu0 0.0
  %364 = vmatpush1.msra.mxu0 0.0
  %365 = vmatprep.subr.mxu0 0.0
  %366 = vmatpush1.msra.mxu0 0.0
  %367 = vmatprep.subr.mxu0 0.0
  %368 = vmatpush1.msra.mxu0 0.0
  %369 = vmatprep.subr.mxu0 0.0
  %370 = vmatpush1.msra.mxu0 0.0
  %371 = vmatprep.subr.mxu0 0.0
  %372 = vmatpush1.msra.mxu0 0.0
  %373 = vmatprep.subr.mxu0 0.0
  %374 = vmatpush1.msra.mxu0 0.0
  %375 = vmatprep.subr.mxu0 0.0
  %376 = vmatpush1.msra.mxu0 0.0
  %377 = vmatprep.subr.mxu0 0.0
  %378 = vmatpush1.msra.mxu0 0.0
  %379 = vmatprep.subr.mxu0 0.0
  %380 = vmatpush1.msra.mxu0 0.0
  %381 = vmatprep.subr.mxu0 0.0
  %382 = vmatpush1.msra.mxu0 0.0
  %383 = vmatprep.subr.mxu0 0.0
  %384 = vmatpush1.msra.mxu0 0.0
  %385 = vmatprep.subr.mxu0 0.0
  %386 = vmatpush1.msra.mxu0 0.0
  %387 = vmatprep.subr.mxu0 0.0
  %388 = vmatpush1.msra.mxu0 0.0
  %389 = vmatprep.subr.mxu0 0.0
  %390 = vmatpush1.msra.mxu0 0.0
  %391 = vmatprep.subr.mxu0 0.0
  %392 = vmatpush1.msra.mxu0 0.0
  %393 = vmatprep.subr.mxu0 0.0
  %394 = vmatpush1.msra.mxu0 0.0
  %395 = vmatprep.subr.mxu0 0.0
  %396 = vmatpush1.msra.mxu0 0.0
  %397 = vmatprep.subr.mxu0 0.0
  %398 = vmatpush1.msra.mxu0 0.0
  %399 = vmatprep.subr.mxu0 0.0
  %400 = vmatpush1.msra.mxu0 0.0
  %401 = vmatprep.subr.mxu0 0.0
  %402 = vmatpush1.msra.mxu0 0.0
  %403 = vmatprep.subr.mxu0 0.0
  %404 = vmatpush1.msra.mxu0 0.0
  %405 = vmatprep.subr.mxu0 0.0
  %406 = vmatpush1.msra.mxu0 0.0
  %407 = vmatprep.subr.mxu0 0.0
  %408 = vmatpush1.msra.mxu0 0.0
  %409 = vmatprep.subr.mxu0 0.0
  %410 = vmatpush1.msra.mxu0 0.0
  %411 = vmatprep.mubr.f32.mxu0 0.0
  %412 = vmatmul.mubr.f32.gmra.mrb[0].mxu0 %v345
  %v413 = vpop.f32.mrb[0].mxu0
  %v414 = vadd.f32 %v147, %v413
  %v415 = vpop.f32.mrb[0].mxu0
  %416 = vdwg.mxu0
  %v417 = vsel %vm225, %v414, -inf
  %418 = vmax.xlane.f32.xlu0 %v417
  %v419 = vpop.xlane.xlu0 %418
  %v420 = vsub.f32 %v414, %v419
  %v421 = vmul.f32 %v420, 1.442695
  %v422 = vpow.pop %v421
  %v423 = vsel %vm225, %v422, 0.0
  %424 = vadd.xlane.f32.xlu0 %v423
  %v425 = vpop.xlane.xlu0 %424
  %v426 = vlog2.pop %v425
  %v427 = vmul.f32 %v426, 0.6931472
  %v428 = vadd.f32 %v419, %v427
  %v429 = vsub.f32 %v414, %v428
  %430 = vmatprep.subr.mxu0 0.0
  %431 = vmatpush1.msra.mxu0 %v25
  %432 = vmatprep.subr.mxu0 0.0
  %433 = vmatpush1.msra.mxu0 %v26
  %434 = vmatprep.subr.mxu0 0.0
  %435 = vmatpush1.msra.mxu0 %v27
  %436 = vmatprep.subr.mxu0 0.0
  %437 = vmatpush1.msra.mxu0 %v28
  %438 = vmatprep.subr.mxu0 0.0
  %439 = vmatpush1.msra.mxu0 0.0
  %440 = vmatprep.subr.mxu0 0.0
  %441 = vmatpush1.msra.mxu0 0.0
  %442 = vmatprep.subr.mxu0 0.0
  %443 = vmatpush1.msra.mxu0 0.0
  %444 = vmatprep.subr.mxu0 0.0
  %445 = vmatpush1.msra.mxu0 0.0
  %446 = vmatprep.subr.mxu0 0.0
  %447 = vmatpush1.msra.mxu0 0.0
  %448 = vmatprep.subr.mxu0 0.0
  %449 = vmatpush1.msra.mxu0 0.0
  %450 = vmatprep.subr.mxu0 0.0
  %451 = vmatpush1.msra.mxu0 0.0
  %452 = vmatprep.subr.mxu0 0.0
  %453 = vmatpush1.msra.mxu0 0.0
  %454 = vmatprep.subr.mxu0 0.0
  %455 = vmatpush1.msra.mxu0 0.0
  %456 = vmatprep.subr.mxu0 0.0
  %457 = vmatpush1.msra.mxu0 0.0
  %458 = vmatprep.subr.mxu0 0.0
  %459 = vmatpush1.msra.mxu0 0.0
  %460 = vmatprep.subr.mxu0 0.0
  %461 = vmatpush1.msra.mxu0 0.0
  %462 = vmatprep.subr.mxu0 0.0
  %463 = vmatpush1.msra.mxu0 0.0
  %464 = vmatprep.subr.mxu0 0.0
  %465 = vmatpush1.msra.mxu0 0.0
  %466 = vmatprep.subr.mxu0 0.0
  %467 = vmatpush1.msra.mxu0 0.0
  %468 = vmatprep.subr.mxu0 0.0
  %469 = vmatpush1.msra.mxu0 0.0
  %470 = vmatprep.subr.mxu0 0.0
  %471 = vmatpush1.msra.mxu0 0.0
  %472 = vmatprep.subr.mxu0 0.0
  %473 = vmatpush1.msra.mxu0 0.0
  %474 = vmatprep.subr.mxu0 0.0
  %475 = vmatpush1.msra.mxu0 0.0
  %476 = vmatprep.subr.mxu0 0.0
  %477 = vmatpush1.msra.mxu0 0.0
  %478 = vmatprep.subr.mxu0 0.0
  %479 = vmatpush1.msra.mxu0 0.0
  %480 = vmatprep.subr.mxu0 0.0
  %481 = vmatpush1.msra.mxu0 0.0
  %482 = vmatprep.subr.mxu0 0.0
  %483 = vmatpush1.msra.mxu0 0.0
  %484 = vmatprep.subr.mxu0 0.0
  %485 = vmatpush1.msra.mxu0 0.0
  %486 = vmatprep.subr.mxu0 0.0
  %487 = vmatpush1.msra.mxu0 0.0
  %488 = vmatprep.subr.mxu0 0.0
  %489 = vmatpush1.msra.mxu0 0.0
  %490 = vmatprep.subr.mxu0 0.0
  %491 = vmatpush1.msra.mxu0 0.0
  %492 = vmatprep.subr.mxu0 0.0
  %493 = vmatpush1.msra.mxu0 0.0
  %494 = vmatprep.mubr.f32.mxu0 0.0
  %495 = vmatmul.mubr.f32.gmra.mrb[0].mxu0 %v345
  %v496 = vpop.f32.mrb[0].mxu0
  %v497 = vadd.f32 0.0, %v496
  %v498 = vpop.f32.mrb[0].mxu0
  %499 = vdwg.mxu0
  %v500 = vadd.f32 %v116, %v497
  %v501 = vxor.u32 %v500, 2147483648
  %v502 = vmul.f32 %v501, 1.442695
  %v503 = vpow.pop %v502
  %v504 = vadd.f32 %v503, 1.0
  %v505 = vrcp.pop %v504
  %v506 = vmul.f32 1.0, %v505
  %v507 = vadd.f32 %v497, %v317
  %509 = vrot.lane.b32.xlu0 %v507, 64
  %v510 = vpop.permute.xlu0 %509
  %v512 = vmul.f32 %v506, %v510
  %514 = vrot.lane.b32.xlu0 %v512, 64
  %v515 = vpop.permute.xlu0 %514
  %v517 = vadd.f32 %v116, %v515
  %v518 = vtanh.pop %v517
  %v519 = vsub.f32 %v341, %v518
  %521 = vrot.lane.b32.xlu0 %v519, 96
  %v522 = vpop.permute.xlu0 %521
  %v524 = vmul.f32 %v506, %v522
  %526 = vrot.lane.b32.xlu0 %v524, 32
  %v527 = vpop.permute.xlu0 %526
  %v529 = vadd.f32 %v518, %v527
  %531 = vrot.lane.b32.xlu0 %v529, 64
  %v532 = vpop.permute.xlu0 %531
  %v533 = vsel %vm152, %v532, 0
  %535 = vmatprep.subr.mxu0 0.0
  %536 = vmatpush1.msra.mxu0 %v29
  %537 = vmatprep.subr.mxu0 0.0
  %538 = vmatpush1.msra.mxu0 %v30
  %539 = vmatprep.subr.mxu0 0.0
  %540 = vmatpush1.msra.mxu0 %v31
  %541 = vmatprep.subr.mxu0 0.0
  %542 = vmatpush1.msra.mxu0 %v32
  %543 = vmatprep.subr.mxu0 0.0
  %544 = vmatpush1.msra.mxu0 0.0
  %545 = vmatprep.subr.mxu0 0.0
  %546 = vmatpush1.msra.mxu0 0.0
  %547 = vmatprep.subr.mxu0 0.0
  %548 = vmatpush1.msra.mxu0 0.0
  %549 = vmatprep.subr.mxu0 0.0
  %550 = vmatpush1.msra.mxu0 0.0
  %551 = vmatprep.subr.mxu0 0.0
  %552 = vmatpush1.msra.mxu0 0.0
  %553 = vmatprep.subr.mxu0 0.0
  %554 = vmatpush1.msra.mxu0 0.0
  %555 = vmatprep.subr.mxu0 0.0
  %556 = vmatpush1.msra.mxu0 0.0
  %557 = vmatprep.subr.mxu0 0.0
  %558 = vmatpush1.msra.mxu0 0.0
  %559 = vmatprep.subr.mxu0 0.0
  %560 = vmatpush1.msra.mxu0 0.0
  %561 = vmatprep.subr.mxu0 0.0
  %562 = vmatpush1.msra.mxu0 0.0
  %563 = vmatprep.subr.mxu0 0.0
  %564 = vmatpush1.msra.mxu0 0.0
  %565 = vmatprep.subr.mxu0 0.0
  %566 = vmatpush1.msra.mxu0 0.0
  %567 = vmatprep.subr.mxu0 0.0
  %568 = vmatpush1.msra.mxu0 0.0
  %569 = vmatprep.subr.mxu0 0.0
  %570 = vmatpush1.msra.mxu0 0.0
  %571 = vmatprep.subr.mxu0 0.0
  %572 = vmatpush1.msra.mxu0 0.0
  %573 = vmatprep.subr.mxu0 0.0
  %574 = vmatpush1.msra.mxu0 0.0
  %575 = vmatprep.subr.mxu0 0.0
  %576 = vmatpush1.msra.mxu0 0.0
  %577 = vmatprep.subr.mxu0 0.0
  %578 = vmatpush1.msra.mxu0 0.0
  %579 = vmatprep.subr.mxu0 0.0
  %580 = vmatpush1.msra.mxu0 0.0
  %581 = vmatprep.subr.mxu0 0.0
  %582 = vmatpush1.msra.mxu0 0.0
  %583 = vmatprep.subr.mxu0 0.0
  %584 = vmatpush1.msra.mxu0 0.0
  %585 = vmatprep.subr.mxu0 0.0
  %586 = vmatpush1.msra.mxu0 0.0
  %587 = vmatprep.subr.mxu0 0.0
  %588 = vmatpush1.msra.mxu0 0.0
  %589 = vmatprep.subr.mxu0 0.0
  %590 = vmatpush1.msra.mxu0 0.0
  %591 = vmatprep.subr.mxu0 0.0
  %592 = vmatpush1.msra.mxu0 0.0
  %593 = vmatprep.subr.mxu0 0.0
  %594 = vmatpush1.msra.mxu0 0.0
  %595 = vmatprep.subr.mxu0 0.0
  %596 = vmatpush1.msra.mxu0 0.0
  %597 = vmatprep.subr.mxu0 0.0
  %598 = vmatpush1.msra.mxu0 0.0
  %599 = vmatprep.mubr.f32.mxu0 0.0
  %600 = vmatmul.mubr.f32.gmra.mrb[0].mxu0 %v533
  %v601 = vpop.f32.mrb[0].mxu0
  %v602 = vadd.f32 %v147, %v601
  %v603 = vpop.f32.mrb[0].mxu0
  %604 = vdwg.mxu0
  %v605 = vsel %vm225, %v602, -inf
  %606 = vmax.xlane.f32.xlu0 %v605
  %v607 = vpop.xlane.xlu0 %606
  %v608 = vsub.f32 %v602, %v607
  %v609 = vmul.f32 %v608, 1.442695
  %v610 = vpow.pop %v609
  %v611 = vsel %vm225, %v610, 0.0
  %612 = vadd.xlane.f32.xlu0 %v611
  %v613 = vpop.xlane.xlu0 %612
  %v614 = vlog2.pop %v613
  %v615 = vmul.f32 %v614, 0.6931472
  %v616 = vadd.f32 %v607, %v615
  %v617 = vsub.f32 %v602, %v616
  %618 = vmatprep.subr.mxu0 0.0
  %619 = vmatpush1.msra.mxu0 %v25
  %620 = vmatprep.subr.mxu0 0.0
  %621 = vmatpush1.msra.mxu0 %v26
  %622 = vmatprep.subr.mxu0 0.0
  %623 = vmatpush1.msra.mxu0 %v27
  %624 = vmatprep.subr.mxu0 0.0
  %625 = vmatpush1.msra.mxu0 %v28
  %626 = vmatprep.subr.mxu0 0.0
  %627 = vmatpush1.msra.mxu0 0.0
  %628 = vmatprep.subr.mxu0 0.0
  %629 = vmatpush1.msra.mxu0 0.0
  %630 = vmatprep.subr.mxu0 0.0
  %631 = vmatpush1.msra.mxu0 0.0
  %632 = vmatprep.subr.mxu0 0.0
  %633 = vmatpush1.msra.mxu0 0.0
  %634 = vmatprep.subr.mxu0 0.0
  %635 = vmatpush1.msra.mxu0 0.0
  %636 = vmatprep.subr.mxu0 0.0
  %637 = vmatpush1.msra.mxu0 0.0
  %638 = vmatprep.subr.mxu0 0.0
  %639 = vmatpush1.msra.mxu0 0.0
  %640 = vmatprep.subr.mxu0 0.0
  %641 = vmatpush1.msra.mxu0 0.0
  %642 = vmatprep.subr.mxu0 0.0
  %643 = vmatpush1.msra.mxu0 0.0
  %644 = vmatprep.subr.mxu0 0.0
  %645 = vmatpush1.msra.mxu0 0.0
  %646 = vmatprep.subr.mxu0 0.0
  %647 = vmatpush1.msra.mxu0 0.0
  %648 = vmatprep.subr.mxu0 0.0
  %649 = vmatpush1.msra.mxu0 0.0
  %650 = vmatprep.subr.mxu0 0.0
  %651 = vmatpush1.msra.mxu0 0.0
  %652 = vmatprep.subr.mxu0 0.0
  %653 = vmatpush1.msra.mxu0 0.0
  %654 = vmatprep.subr.mxu0 0.0
  %655 = vmatpush1.msra.mxu0 0.0
  %656 = vmatprep.subr.mxu0 0.0
  %657 = vmatpush1.msra.mxu0 0.0
  %658 = vmatprep.subr.mxu0 0.0
  %659 = vmatpush1.msra.mxu0 0.0
  %660 = vmatprep.subr.mxu0 0.0
  %661 = vmatpush1.msra.mxu0 0.0
  %662 = vmatprep.subr.mxu0 0.0
  %663 = vmatpush1.msra.mxu0 0.0
  %664 = vmatprep.subr.mxu0 0.0
  %665 = vmatpush1.msra.mxu0 0.0
  %666 = vmatprep.subr.mxu0 0.0
  %667 = vmatpush1.msra.mxu0 0.0
  %668 = vmatprep.subr.mxu0 0.0
  %669 = vmatpush1.msra.mxu0 0.0
  %670 = vmatprep.subr.mxu0 0.0
  %671 = vmatpush1.msra.mxu0 0.0
  %672 = vmatprep.subr.mxu0 0.0
  %673 = vmatpush1.msra.mxu0 0.0
  %674 = vmatprep.subr.mxu0 0.0
  %675 = vmatpush1.msra.mxu0 0.0
  %676 = vmatprep.subr.mxu0 0.0
  %677 = vmatpush1.msra.mxu0 0.0
  %678 = vmatprep.subr.mxu0 0.0
  %679 = vmatpush1.msra.mxu0 0.0
  %680 = vmatprep.subr.mxu0 0.0
  %681 = vmatpush1.msra.mxu0 0.0
  %682 = vmatprep.mubr.f32.mxu0 0.0
  %683 = vmatmul.mubr.f32.gmra.mrb[0].mxu0 %v533
  %v684 = vpop.f32.mrb[0].mxu0
  %v685 = vadd.f32 0.0, %v684
  %v686 = vpop.f32.mrb[0].mxu0
  %687 = vdwg.mxu0
  %v688 = vadd.f32 %v116, %v685
  %v689 = vxor.u32 %v688, 2147483648
  %v690 = vmul.f32 %v689, 1.442695
  %v691 = vpow.pop %v690
  %v692 = vadd.f32 %v691, 1.0
  %v693 = vrcp.pop %v692
  %v694 = vmul.f32 1.0, %v693
  %v695 = vadd.f32 %v685, %v317
  %697 = vrot.lane.b32.xlu0 %v695, 64
  %v698 = vpop.permute.xlu0 %697
  %v700 = vmul.f32 %v694, %v698
  %702 = vrot.lane.b32.xlu0 %v700, 64
  %v703 = vpop.permute.xlu0 %702
  %v705 = vadd.f32 %v116, %v703
  %v706 = vtanh.pop %v705
  %v707 = vsub.f32 %v529, %v706
  %709 = vrot.lane.b32.xlu0 %v707, 96
  %v710 = vpop.permute.xlu0 %709
  %v712 = vmul.f32 %v694, %v710
  %714 = vrot.lane.b32.xlu0 %v712, 32
  %v715 = vpop.permute.xlu0 %714
  %v717 = vadd.f32 %v706, %v715
  %719 = vrot.lane.b32.xlu0 %v717, 64
  %v720 = vpop.permute.xlu0 %719
  %v721 = vsel %vm152, %v720, 0
  %723 = vmatprep.subr.mxu0 0.0
  %724 = vmatpush1.msra.mxu0 %v29
  %725 = vmatprep.subr.mxu0 0.0
  %726 = vmatpush1.msra.mxu0 %v30
  %727 = vmatprep.subr.mxu0 0.0
  %728 = vmatpush1.msra.mxu0 %v31
  %729 = vmatprep.subr.mxu0 0.0
  %730 = vmatpush1.msra.mxu0 %v32
  %731 = vmatprep.subr.mxu0 0.0
  %732 = vmatpush1.msra.mxu0 0.0
  %733 = vmatprep.subr.mxu0 0.0
  %734 = vmatpush1.msra.mxu0 0.0
  %735 = vmatprep.subr.mxu0 0.0
  %736 = vmatpush1.msra.mxu0 0.0
  %737 = vmatprep.subr.mxu0 0.0
  %738 = vmatpush1.msra.mxu0 0.0
  %739 = vmatprep.subr.mxu0 0.0
  %740 = vmatpush1.msra.mxu0 0.0
  %741 = vmatprep.subr.mxu0 0.0
  %742 = vmatpush1.msra.mxu0 0.0
  %743 = vmatprep.subr.mxu0 0.0
  %744 = vmatpush1.msra.mxu0 0.0
  %745 = vmatprep.subr.mxu0 0.0
  %746 = vmatpush1.msra.mxu0 0.0
  %747 = vmatprep.subr.mxu0 0.0
  %748 = vmatpush1.msra.mxu0 0.0
  %749 = vmatprep.subr.mxu0 0.0
  %750 = vmatpush1.msra.mxu0 0.0
  %751 = vmatprep.subr.mxu0 0.0
  %752 = vmatpush1.msra.mxu0 0.0
  %753 = vmatprep.subr.mxu0 0.0
  %754 = vmatpush1.msra.mxu0 0.0
  %755 = vmatprep.subr.mxu0 0.0
  %756 = vmatpush1.msra.mxu0 0.0
  %757 = vmatprep.subr.mxu0 0.0
  %758 = vmatpush1.msra.mxu0 0.0
  %759 = vmatprep.subr.mxu0 0.0
  %760 = vmatpush1.msra.mxu0 0.0
  %761 = vmatprep.subr.mxu0 0.0
  %762 = vmatpush1.msra.mxu0 0.0
  %763 = vmatprep.subr.mxu0 0.0
  %764 = vmatpush1.msra.mxu0 0.0
  %765 = vmatprep.subr.mxu0 0.0
  %766 = vmatpush1.msra.mxu0 0.0
  %767 = vmatprep.subr.mxu0 0.0
  %768 = vmatpush1.msra.mxu0 0.0
  %769 = vmatprep.subr.mxu0 0.0
  %770 = vmatpush1.msra.mxu0 0.0
  %771 = vmatprep.subr.mxu0 0.0
  %772 = vmatpush1.msra.mxu0 0.0
  %773 = vmatprep.subr.mxu0 0.0
  %774 = vmatpush1.msra.mxu0 0.0
  %775 = vmatprep.subr.mxu0 0.0
  %776 = vmatpush1.msra.mxu0 0.0
  %777 = vmatprep.subr.mxu0 0.0
  %778 = vmatpush1.msra.mxu0 0.0
  %779 = vmatprep.subr.mxu0 0.0
  %780 = vmatpush1.msra.mxu0 0.0
  %781 = vmatprep.subr.mxu0 0.0
  %782 = vmatpush1.msra.mxu0 0.0
  %783 = vmatprep.subr.mxu0 0.0
  %784 = vmatpush1.msra.mxu0 0.0
  %785 = vmatprep.subr.mxu0 0.0
  %786 = vmatpush1.msra.mxu0 0.0
  %787 = vmatprep.mubr.f32.mxu0 0.0
  %788 = vmatmul.mubr.f32.gmra.mrb[0].mxu0 %v721
  %v789 = vpop.f32.mrb[0].mxu0
  %v790 = vadd.f32 %v147, %v789
  %v791 = vpop.f32.mrb[0].mxu0
  %792 = vdwg.mxu0
  %v793 = vsel %vm225, %v790, -inf
  %794 = vmax.xlane.f32.xlu0 %v793
  %v795 = vpop.xlane.xlu0 %794
  %v796 = vsub.f32 %v790, %v795
  %v797 = vmul.f32 %v796, 1.442695
  %v798 = vpow.pop %v797
  %v799 = vsel %vm225, %v798, 0.0
  %800 = vadd.xlane.f32.xlu0 %v799
  %v801 = vpop.xlane.xlu0 %800
  %v802 = vlog2.pop %v801
  %v803 = vmul.f32 %v802, 0.6931472
  %v804 = vadd.f32 %v795, %v803
  %v805 = vsub.f32 %v790, %v804
  %806 = vmatprep.subr.mxu0 0.0
  %807 = vmatpush1.msra.mxu0 %v25
  %808 = vmatprep.subr.mxu0 0.0
  %809 = vmatpush1.msra.mxu0 %v26
  %810 = vmatprep.subr.mxu0 0.0
  %811 = vmatpush1.msra.mxu0 %v27
  %812 = vmatprep.subr.mxu0 0.0
  %813 = vmatpush1.msra.mxu0 %v28
  %814 = vmatprep.subr.mxu0 0.0
  %815 = vmatpush1.msra.mxu0 0.0
  %816 = vmatprep.subr.mxu0 0.0
  %817 = vmatpush1.msra.mxu0 0.0
  %818 = vmatprep.subr.mxu0 0.0
  %819 = vmatpush1.msra.mxu0 0.0
  %820 = vmatprep.subr.mxu0 0.0
  %821 = vmatpush1.msra.mxu0 0.0
  %822 = vmatprep.subr.mxu0 0.0
  %823 = vmatpush1.msra.mxu0 0.0
  %824 = vmatprep.subr.mxu0 0.0
  %825 = vmatpush1.msra.mxu0 0.0
  %826 = vmatprep.subr.mxu0 0.0
  %827 = vmatpush1.msra.mxu0 0.0
  %828 = vmatprep.subr.mxu0 0.0
  %829 = vmatpush1.msra.mxu0 0.0
  %830 = vmatprep.subr.mxu0 0.0
  %831 = vmatpush1.msra.mxu0 0.0
  %832 = vmatprep.subr.mxu0 0.0
  %833 = vmatpush1.msra.mxu0 0.0
  %834 = vmatprep.subr.mxu0 0.0
  %835 = vmatpush1.msra.mxu0 0.0
  %836 = vmatprep.subr.mxu0 0.0
  %837 = vmatpush1.msra.mxu0 0.0
  %838 = vmatprep.subr.mxu0 0.0
  %839 = vmatpush1.msra.mxu0 0.0
  %840 = vmatprep.subr.mxu0 0.0
  %841 = vmatpush1.msra.mxu0 0.0
  %842 = vmatprep.subr.mxu0 0.0
  %843 = vmatpush1.msra.mxu0 0.0
  %844 = vmatprep.subr.mxu0 0.0
  %845 = vmatpush1.msra.mxu0 0.0
  %846 = vmatprep.subr.mxu0 0.0
  %847 = vmatpush1.msra.mxu0 0.0
  %848 = vmatprep.subr.mxu0 0.0
  %849 = vmatpush1.msra.mxu0 0.0
  %850 = vmatprep.subr.mxu0 0.0
  %851 = vmatpush1.msra.mxu0 0.0
  %852 = vmatprep.subr.mxu0 0.0
  %853 = vmatpush1.msra.mxu0 0.0
  %854 = vmatprep.subr.mxu0 0.0
  %855 = vmatpush1.msra.mxu0 0.0
  %856 = vmatprep.subr.mxu0 0.0
  %857 = vmatpush1.msra.mxu0 0.0
  %858 = vmatprep.subr.mxu0 0.0
  %859 = vmatpush1.msra.mxu0 0.0
  %860 = vmatprep.subr.mxu0 0.0
  %861 = vmatpush1.msra.mxu0 0.0
  %862 = vmatprep.subr.mxu0 0.0
  %863 = vmatpush1.msra.mxu0 0.0
  %864 = vmatprep.subr.mxu0 0.0
  %865 = vmatpush1.msra.mxu0 0.0
  %866 = vmatprep.subr.mxu0 0.0
  %867 = vmatpush1.msra.mxu0 0.0
  %868 = vmatprep.subr.mxu0 0.0
  %869 = vmatpush1.msra.mxu0 0.0
  %870 = vmatprep.mubr.f32.mxu0 0.0
  %871 = vmatmul.mubr.f32.gmra.mrb[0].mxu0 %v721
  %v872 = vpop.f32.mrb[0].mxu0
  %v873 = vadd.f32 0.0, %v872
  %v874 = vpop.f32.mrb[0].mxu0
  %875 = vdwg.mxu0
  %v876 = vadd.f32 %v116, %v873
  %v877 = vxor.u32 %v876, 2147483648
  %v878 = vmul.f32 %v877, 1.442695
  %v879 = vpow.pop %v878
  %v880 = vadd.f32 %v879, 1.0
  %v881 = vrcp.pop %v880
  %v882 = vmul.f32 1.0, %v881
  %v883 = vadd.f32 %v873, %v317
  %885 = vrot.lane.b32.xlu0 %v883, 64
  %v886 = vpop.permute.xlu0 %885
  %v888 = vmul.f32 %v882, %v886
  %890 = vrot.lane.b32.xlu0 %v888, 64
  %v891 = vpop.permute.xlu0 %890
  %v893 = vadd.f32 %v116, %v891
  %v894 = vtanh.pop %v893
  %v895 = vsub.f32 %v717, %v894
  %897 = vrot.lane.b32.xlu0 %v895, 96
  %v898 = vpop.permute.xlu0 %897
  %v900 = vmul.f32 %v882, %v898
  %902 = vrot.lane.b32.xlu0 %v900, 32
  %v903 = vpop.permute.xlu0 %902
  %v905 = vadd.f32 %v894, %v903
  %907 = vrot.lane.b32.xlu0 %v905, 64
  %v908 = vpop.permute.xlu0 %907
  %v909 = vsel %vm152, %v908, 0
  %911 = vmatprep.subr.mxu0 0.0
  %912 = vmatpush1.msra.mxu0 %v29
  %913 = vmatprep.subr.mxu0 0.0
  %914 = vmatpush1.msra.mxu0 %v30
  %915 = vmatprep.subr.mxu0 0.0
  %916 = vmatpush1.msra.mxu0 %v31
  %917 = vmatprep.subr.mxu0 0.0
  %918 = vmatpush1.msra.mxu0 %v32
  %919 = vmatprep.subr.mxu0 0.0
  %920 = vmatpush1.msra.mxu0 0.0
  %921 = vmatprep.subr.mxu0 0.0
  %922 = vmatpush1.msra.mxu0 0.0
  %923 = vmatprep.subr.mxu0 0.0
  %924 = vmatpush1.msra.mxu0 0.0
  %925 = vmatprep.subr.mxu0 0.0
  %926 = vmatpush1.msra.mxu0 0.0
  %927 = vmatprep.subr.mxu0 0.0
  %928 = vmatpush1.msra.mxu0 0.0
  %929 = vmatprep.subr.mxu0 0.0
  %930 = vmatpush1.msra.mxu0 0.0
  %931 = vmatprep.subr.mxu0 0.0
  %932 = vmatpush1.msra.mxu0 0.0
  %933 = vmatprep.subr.mxu0 0.0
  %934 = vmatpush1.msra.mxu0 0.0
  %935 = vmatprep.subr.mxu0 0.0
  %936 = vmatpush1.msra.mxu0 0.0
  %937 = vmatprep.subr.mxu0 0.0
  %938 = vmatpush1.msra.mxu0 0.0
  %939 = vmatprep.subr.mxu0 0.0
  %940 = vmatpush1.msra.mxu0 0.0
  %941 = vmatprep.subr.mxu0 0.0
  %942 = vmatpush1.msra.mxu0 0.0
  %943 = vmatprep.subr.mxu0 0.0
  %944 = vmatpush1.msra.mxu0 0.0
  %945 = vmatprep.subr.mxu0 0.0
  %946 = vmatpush1.msra.mxu0 0.0
  %947 = vmatprep.subr.mxu0 0.0
  %948 = vmatpush1.msra.mxu0 0.0
  %949 = vmatprep.subr.mxu0 0.0
  %950 = vmatpush1.msra.mxu0 0.0
  %951 = vmatprep.subr.mxu0 0.0
  %952 = vmatpush1.msra.mxu0 0.0
  %953 = vmatprep.subr.mxu0 0.0
  %954 = vmatpush1.msra.mxu0 0.0
  %955 = vmatprep.subr.mxu0 0.0
  %956 = vmatpush1.msra.mxu0 0.0
  %957 = vmatprep.subr.mxu0 0.0
  %958 = vmatpush1.msra.mxu0 0.0
  %959 = vmatprep.subr.mxu0 0.0
  %960 = vmatpush1.msra.mxu0 0.0
  %961 = vmatprep.subr.mxu0 0.0
  %962 = vmatpush1.msra.mxu0 0.0
  %963 = vmatprep.subr.mxu0 0.0
  %964 = vmatpush1.msra.mxu0 0.0
  %965 = vmatprep.subr.mxu0 0.0
  %966 = vmatpush1.msra.mxu0 0.0
  %967 = vmatprep.subr.mxu0 0.0
  %968 = vmatpush1.msra.mxu0 0.0
  %969 = vmatprep.subr.mxu0 0.0
  %970 = vmatpush1.msra.mxu0 0.0
  %971 = vmatprep.subr.mxu0 0.0
  %972 = vmatpush1.msra.mxu0 0.0
  %973 = vmatprep.subr.mxu0 0.0
  %974 = vmatpush1.msra.mxu0 0.0
  %975 = vmatprep.mubr.f32.mxu0 0.0
  %976 = vmatmul.mubr.f32.gmra.mrb[0].mxu0 %v909
  %v977 = vpop.f32.mrb[0].mxu0
  %v978 = vadd.f32 %v147, %v977
  %v979 = vpop.f32.mrb[0].mxu0
  %980 = vdwg.mxu0
  %v981 = vsel %vm225, %v978, -inf
  %982 = vmax.xlane.f32.xlu0 %v981
  %v983 = vpop.xlane.xlu0 %982
  %v984 = vsub.f32 %v978, %v983
  %v985 = vmul.f32 %v984, 1.442695
  %v986 = vpow.pop %v985
  %v987 = vsel %vm225, %v986, 0.0
  %988 = vadd.xlane.f32.xlu0 %v987
  %v989 = vpop.xlane.xlu0 %988
  %v990 = vlog2.pop %v989
  %v991 = vmul.f32 %v990, 0.6931472
  %v992 = vadd.f32 %v983, %v991
  %v993 = vsub.f32 %v978, %v992
  %994 = vmatprep.subr.mxu0 0.0
  %995 = vmatpush1.msra.mxu0 %v25
  %996 = vmatprep.subr.mxu0 0.0
  %997 = vmatpush1.msra.mxu0 %v26
  %998 = vmatprep.subr.mxu0 0.0
  %999 = vmatpush1.msra.mxu0 %v27
  %1000 = vmatprep.subr.mxu0 0.0
  %1001 = vmatpush1.msra.mxu0 %v28
  %1002 = vmatprep.subr.mxu0 0.0
  %1003 = vmatpush1.msra.mxu0 0.0
  %1004 = vmatprep.subr.mxu0 0.0
  %1005 = vmatpush1.msra.mxu0 0.0
  %1006 = vmatprep.subr.mxu0 0.0
  %1007 = vmatpush1.msra.mxu0 0.0
  %1008 = vmatprep.subr.mxu0 0.0
  %1009 = vmatpush1.msra.mxu0 0.0
  %1010 = vmatprep.subr.mxu0 0.0
  %1011 = vmatpush1.msra.mxu0 0.0
  %1012 = vmatprep.subr.mxu0 0.0
  %1013 = vmatpush1.msra.mxu0 0.0
  %1014 = vmatprep.subr.mxu0 0.0
  %1015 = vmatpush1.msra.mxu0 0.0
  %1016 = vmatprep.subr.mxu0 0.0
  %1017 = vmatpush1.msra.mxu0 0.0
  %1018 = vmatprep.subr.mxu0 0.0
  %1019 = vmatpush1.msra.mxu0 0.0
  %1020 = vmatprep.subr.mxu0 0.0
  %1021 = vmatpush1.msra.mxu0 0.0
  %1022 = vmatprep.subr.mxu0 0.0
  %1023 = vmatpush1.msra.mxu0 0.0
  %1024 = vmatprep.subr.mxu0 0.0
  %1025 = vmatpush1.msra.mxu0 0.0
  %1026 = vmatprep.subr.mxu0 0.0
  %1027 = vmatpush1.msra.mxu0 0.0
  %1028 = vmatprep.subr.mxu0 0.0
  %1029 = vmatpush1.msra.mxu0 0.0
  %1030 = vmatprep.subr.mxu0 0.0
  %1031 = vmatpush1.msra.mxu0 0.0
  %1032 = vmatprep.subr.mxu0 0.0
  %1033 = vmatpush1.msra.mxu0 0.0
  %1034 = vmatprep.subr.mxu0 0.0
  %1035 = vmatpush1.msra.mxu0 0.0
  %1036 = vmatprep.subr.mxu0 0.0
  %1037 = vmatpush1.msra.mxu0 0.0
  %1038 = vmatprep.subr.mxu0 0.0
  %1039 = vmatpush1.msra.mxu0 0.0
  %1040 = vmatprep.subr.mxu0 0.0
  %1041 = vmatpush1.msra.mxu0 0.0
  %1042 = vmatprep.subr.mxu0 0.0
  %1043 = vmatpush1.msra.mxu0 0.0
  %1044 = vmatprep.subr.mxu0 0.0
  %1045 = vmatpush1.msra.mxu0 0.0
  %1046 = vmatprep.subr.mxu0 0.0
  %1047 = vmatpush1.msra.mxu0 0.0
  %1048 = vmatprep.subr.mxu0 0.0
  %1049 = vmatpush1.msra.mxu0 0.0
  %1050 = vmatprep.subr.mxu0 0.0
  %1051 = vmatpush1.msra.mxu0 0.0
  %1052 = vmatprep.subr.mxu0 0.0
  %1053 = vmatpush1.msra.mxu0 0.0
  %1054 = vmatprep.subr.mxu0 0.0
  %1055 = vmatpush1.msra.mxu0 0.0
  %1056 = vmatprep.subr.mxu0 0.0
  %1057 = vmatpush1.msra.mxu0 0.0
  %1058 = vmatprep.mubr.f32.mxu0 0.0
  %1059 = vmatmul.mubr.f32.gmra.mrb[0].mxu0 %v909
  %v1060 = vpop.f32.mrb[0].mxu0
  %v1061 = vadd.f32 0.0, %v1060
  %v1062 = vpop.f32.mrb[0].mxu0
  %1063 = vdwg.mxu0
  %v1064 = vadd.f32 %v116, %v1061
  %v1065 = vxor.u32 %v1064, 2147483648
  %v1066 = vmul.f32 %v1065, 1.442695
  %v1067 = vpow.pop %v1066
  %v1068 = vadd.f32 %v1067, 1.0
  %v1069 = vrcp.pop %v1068
  %v1070 = vmul.f32 1.0, %v1069
  %v1071 = vadd.f32 %v1061, %v317
  %1073 = vrot.lane.b32.xlu0 %v1071, 64
  %v1074 = vpop.permute.xlu0 %1073
  %v1076 = vmul.f32 %v1070, %v1074
  %1078 = vrot.lane.b32.xlu0 %v1076, 64
  %v1079 = vpop.permute.xlu0 %1078
  %v1081 = vadd.f32 %v116, %v1079
  %v1082 = vtanh.pop %v1081
  %v1083 = vsub.f32 %v905, %v1082
  %1085 = vrot.lane.b32.xlu0 %v1083, 96
  %v1086 = vpop.permute.xlu0 %1085
  %v1088 = vmul.f32 %v1070, %v1086
  %1090 = vrot.lane.b32.xlu0 %v1088, 32
  %v1091 = vpop.permute.xlu0 %1090
  %v1093 = vadd.f32 %v1082, %v1091
  %1095 = vrot.lane.b32.xlu0 %v1093, 64
  %v1096 = vpop.permute.xlu0 %1095
  %v1097 = vsel %vm152, %v1096, 0
  %1099 = vmatprep.subr.mxu0 0.0
  %1100 = vmatpush1.msra.mxu0 %v29
  %1101 = vmatprep.subr.mxu0 0.0
  %1102 = vmatpush1.msra.mxu0 %v30
  %1103 = vmatprep.subr.mxu0 0.0
  %1104 = vmatpush1.msra.mxu0 %v31
  %1105 = vmatprep.subr.mxu0 0.0
  %1106 = vmatpush1.msra.mxu0 %v32
  %1107 = vmatprep.subr.mxu0 0.0
  %1108 = vmatpush1.msra.mxu0 0.0
  %1109 = vmatprep.subr.mxu0 0.0
  %1110 = vmatpush1.msra.mxu0 0.0
  %1111 = vmatprep.subr.mxu0 0.0
  %1112 = vmatpush1.msra.mxu0 0.0
  %1113 = vmatprep.subr.mxu0 0.0
  %1114 = vmatpush1.msra.mxu0 0.0
  %1115 = vmatprep.subr.mxu0 0.0
  %1116 = vmatpush1.msra.mxu0 0.0
  %1117 = vmatprep.subr.mxu0 0.0
  %1118 = vmatpush1.msra.mxu0 0.0
  %1119 = vmatprep.subr.mxu0 0.0
  %1120 = vmatpush1.msra.mxu0 0.0
  %1121 = vmatprep.subr.mxu0 0.0
  %1122 = vmatpush1.msra.mxu0 0.0
  %1123 = vmatprep.subr.mxu0 0.0
  %1124 = vmatpush1.msra.mxu0 0.0
  %1125 = vmatprep.subr.mxu0 0.0
  %1126 = vmatpush1.msra.mxu0 0.0
  %1127 = vmatprep.subr.mxu0 0.0
  %1128 = vmatpush1.msra.mxu0 0.0
  %1129 = vmatprep.subr.mxu0 0.0
  %1130 = vmatpush1.msra.mxu0 0.0
  %1131 = vmatprep.subr.mxu0 0.0
  %1132 = vmatpush1.msra.mxu0 0.0
  %1133 = vmatprep.subr.mxu0 0.0
  %1134 = vmatpush1.msra.mxu0 0.0
  %1135 = vmatprep.subr.mxu0 0.0
  %1136 = vmatpush1.msra.mxu0 0.0
  %1137 = vmatprep.subr.mxu0 0.0
  %1138 = vmatpush1.msra.mxu0 0.0
  %1139 = vmatprep.subr.mxu0 0.0
  %1140 = vmatpush1.msra.mxu0 0.0
  %1141 = vmatprep.subr.mxu0 0.0
  %1142 = vmatpush1.msra.mxu0 0.0
  %1143 = vmatprep.subr.mxu0 0.0
  %1144 = vmatpush1.msra.mxu0 0.0
  %1145 = vmatprep.subr.mxu0 0.0
  %1146 = vmatpush1.msra.mxu0 0.0
  %1147 = vmatprep.subr.mxu0 0.0
  %1148 = vmatpush1.msra.mxu0 0.0
  %1149 = vmatprep.subr.mxu0 0.0
  %1150 = vmatpush1.msra.mxu0 0.0
  %1151 = vmatprep.subr.mxu0 0.0
  %1152 = vmatpush1.msra.mxu0 0.0
  %1153 = vmatprep.subr.mxu0 0.0
  %1154 = vmatpush1.msra.mxu0 0.0
  %1155 = vmatprep.subr.mxu0 0.0
  %1156 = vmatpush1.msra.mxu0 0.0
  %1157 = vmatprep.subr.mxu0 0.0
  %1158 = vmatpush1.msra.mxu0 0.0
  %1159 = vmatprep.subr.mxu0 0.0
  %1160 = vmatpush1.msra.mxu0 0.0
  %1161 = vmatprep.subr.mxu0 0.0
  %1162 = vmatpush1.msra.mxu0 0.0
  %1163 = vmatprep.mubr.f32.mxu0 0.0
  %1164 = vmatmul.mubr.f32.gmra.mrb[0].mxu0 %v1097
  %v1165 = vpop.f32.mrb[0].mxu0
  %v1166 = vadd.f32 %v147, %v1165
  %v1167 = vpop.f32.mrb[0].mxu0
  %1168 = vdwg.mxu0
  %v1169 = vsel %vm225, %v1166, -inf
  %1170 = vmax.xlane.f32.xlu0 %v1169
  %v1171 = vpop.xlane.xlu0 %1170
  %v1172 = vsub.f32 %v1166, %v1171
  %v1173 = vmul.f32 %v1172, 1.442695
  %v1174 = vpow.pop %v1173
  %v1175 = vsel %vm225, %v1174, 0.0
  %1176 = vadd.xlane.f32.xlu0 %v1175
  %v1177 = vpop.xlane.xlu0 %1176
  %v1178 = vlog2.pop %v1177
  %v1179 = vmul.f32 %v1178, 0.6931472
  %v1180 = vadd.f32 %v1171, %v1179
  %v1181 = vsub.f32 %v1166, %v1180
  %1182 = vmatprep.subr.mxu0 0.0
  %1183 = vmatpush1.msra.mxu0 %v25
  %1184 = vmatprep.subr.mxu0 0.0
  %1185 = vmatpush1.msra.mxu0 %v26
  %1186 = vmatprep.subr.mxu0 0.0
  %1187 = vmatpush1.msra.mxu0 %v27
  %1188 = vmatprep.subr.mxu0 0.0
  %1189 = vmatpush1.msra.mxu0 %v28
  %1190 = vmatprep.subr.mxu0 0.0
  %1191 = vmatpush1.msra.mxu0 0.0
  %1192 = vmatprep.subr.mxu0 0.0
  %1193 = vmatpush1.msra.mxu0 0.0
  %1194 = vmatprep.subr.mxu0 0.0
  %1195 = vmatpush1.msra.mxu0 0.0
  %1196 = vmatprep.subr.mxu0 0.0
  %1197 = vmatpush1.msra.mxu0 0.0
  %1198 = vmatprep.subr.mxu0 0.0
  %1199 = vmatpush1.msra.mxu0 0.0
  %1200 = vmatprep.subr.mxu0 0.0
  %1201 = vmatpush1.msra.mxu0 0.0
  %1202 = vmatprep.subr.mxu0 0.0
  %1203 = vmatpush1.msra.mxu0 0.0
  %1204 = vmatprep.subr.mxu0 0.0
  %1205 = vmatpush1.msra.mxu0 0.0
  %1206 = vmatprep.subr.mxu0 0.0
  %1207 = vmatpush1.msra.mxu0 0.0
  %1208 = vmatprep.subr.mxu0 0.0
  %1209 = vmatpush1.msra.mxu0 0.0
  %1210 = vmatprep.subr.mxu0 0.0
  %1211 = vmatpush1.msra.mxu0 0.0
  %1212 = vmatprep.subr.mxu0 0.0
  %1213 = vmatpush1.msra.mxu0 0.0
  %1214 = vmatprep.subr.mxu0 0.0
  %1215 = vmatpush1.msra.mxu0 0.0
  %1216 = vmatprep.subr.mxu0 0.0
  %1217 = vmatpush1.msra.mxu0 0.0
  %1218 = vmatprep.subr.mxu0 0.0
  %1219 = vmatpush1.msra.mxu0 0.0
  %1220 = vmatprep.subr.mxu0 0.0
  %1221 = vmatpush1.msra.mxu0 0.0
  %1222 = vmatprep.subr.mxu0 0.0
  %1223 = vmatpush1.msra.mxu0 0.0
  %1224 = vmatprep.subr.mxu0 0.0
  %1225 = vmatpush1.msra.mxu0 0.0
  %1226 = vmatprep.subr.mxu0 0.0
  %1227 = vmatpush1.msra.mxu0 0.0
  %1228 = vmatprep.subr.mxu0 0.0
  %1229 = vmatpush1.msra.mxu0 0.0
  %1230 = vmatprep.subr.mxu0 0.0
  %1231 = vmatpush1.msra.mxu0 0.0
  %1232 = vmatprep.subr.mxu0 0.0
  %1233 = vmatpush1.msra.mxu0 0.0
  %1234 = vmatprep.subr.mxu0 0.0
  %1235 = vmatpush1.msra.mxu0 0.0
  %1236 = vmatprep.subr.mxu0 0.0
  %1237 = vmatpush1.msra.mxu0 0.0
  %1238 = vmatprep.subr.mxu0 0.0
  %1239 = vmatpush1.msra.mxu0 0.0
  %1240 = vmatprep.subr.mxu0 0.0
  %1241 = vmatpush1.msra.mxu0 0.0
  %1242 = vmatprep.subr.mxu0 0.0
  %1243 = vmatpush1.msra.mxu0 0.0
  %1244 = vmatprep.subr.mxu0 0.0
  %1245 = vmatpush1.msra.mxu0 0.0
  %1246 = vmatprep.mubr.f32.mxu0 0.0
  %1247 = vmatmul.mubr.f32.gmra.mrb[0].mxu0 %v1097
  %v1248 = vpop.f32.mrb[0].mxu0
  %v1249 = vadd.f32 0.0, %v1248
  %v1250 = vpop.f32.mrb[0].mxu0
  %1251 = vdwg.mxu0
  %v1252 = vadd.f32 %v116, %v1249
  %v1253 = vxor.u32 %v1252, 2147483648
  %v1254 = vmul.f32 %v1253, 1.442695
  %v1255 = vpow.pop %v1254
  %v1256 = vadd.f32 %v1255, 1.0
  %v1257 = vrcp.pop %v1256
  %v1258 = vmul.f32 1.0, %v1257
  %v1259 = vadd.f32 %v1249, %v317
  %1261 = vrot.lane.b32.xlu0 %v1259, 64
  %v1262 = vpop.permute.xlu0 %1261
  %v1264 = vmul.f32 %v1258, %v1262
  %1266 = vrot.lane.b32.xlu0 %v1264, 64
  %v1267 = vpop.permute.xlu0 %1266
  %v1269 = vadd.f32 %v116, %v1267
  %v1270 = vtanh.pop %v1269
  %v1271 = vsub.f32 %v1093, %v1270
  %1273 = vrot.lane.b32.xlu0 %v1271, 96
  %v1274 = vpop.permute.xlu0 %1273
  %v1276 = vmul.f32 %v1258, %v1274
  %1278 = vrot.lane.b32.xlu0 %v1276, 32
  %v1279 = vpop.permute.xlu0 %1278
  %v1281 = vadd.f32 %v1270, %v1279
  %1283 = vrot.lane.b32.xlu0 %v1281, 64
  %v1284 = vpop.permute.xlu0 %1283
  %v1285 = vsel %vm152, %v1284, 0
  %1287 = vmatprep.subr.mxu0 0.0
  %1288 = vmatpush1.msra.mxu0 %v29
  %1289 = vmatprep.subr.mxu0 0.0
  %1290 = vmatpush1.msra.mxu0 %v30
  %1291 = vmatprep.subr.mxu0 0.0
  %1292 = vmatpush1.msra.mxu0 %v31
  %1293 = vmatprep.subr.mxu0 0.0
  %1294 = vmatpush1.msra.mxu0 %v32
  %1295 = vmatprep.subr.mxu0 0.0
  %1296 = vmatpush1.msra.mxu0 0.0
  %1297 = vmatprep.subr.mxu0 0.0
  %1298 = vmatpush1.msra.mxu0 0.0
  %1299 = vmatprep.subr.mxu0 0.0
  %1300 = vmatpush1.msra.mxu0 0.0
  %1301 = vmatprep.subr.mxu0 0.0
  %1302 = vmatpush1.msra.mxu0 0.0
  %1303 = vmatprep.subr.mxu0 0.0
  %1304 = vmatpush1.msra.mxu0 0.0
  %1305 = vmatprep.subr.mxu0 0.0
  %1306 = vmatpush1.msra.mxu0 0.0
  %1307 = vmatprep.subr.mxu0 0.0
  %1308 = vmatpush1.msra.mxu0 0.0
  %1309 = vmatprep.subr.mxu0 0.0
  %1310 = vmatpush1.msra.mxu0 0.0
  %1311 = vmatprep.subr.mxu0 0.0
  %1312 = vmatpush1.msra.mxu0 0.0
  %1313 = vmatprep.subr.mxu0 0.0
  %1314 = vmatpush1.msra.mxu0 0.0
  %1315 = vmatprep.subr.mxu0 0.0
  %1316 = vmatpush1.msra.mxu0 0.0
  %1317 = vmatprep.subr.mxu0 0.0
  %1318 = vmatpush1.msra.mxu0 0.0
  %1319 = vmatprep.subr.mxu0 0.0
  %1320 = vmatpush1.msra.mxu0 0.0
  %1321 = vmatprep.subr.mxu0 0.0
  %1322 = vmatpush1.msra.mxu0 0.0
  %1323 = vmatprep.subr.mxu0 0.0
  %1324 = vmatpush1.msra.mxu0 0.0
  %1325 = vmatprep.subr.mxu0 0.0
  %1326 = vmatpush1.msra.mxu0 0.0
  %1327 = vmatprep.subr.mxu0 0.0
  %1328 = vmatpush1.msra.mxu0 0.0
  %1329 = vmatprep.subr.mxu0 0.0
  %1330 = vmatpush1.msra.mxu0 0.0
  %1331 = vmatprep.subr.mxu0 0.0
  %1332 = vmatpush1.msra.mxu0 0.0
  %1333 = vmatprep.subr.mxu0 0.0
  %1334 = vmatpush1.msra.mxu0 0.0
  %1335 = vmatprep.subr.mxu0 0.0
  %1336 = vmatpush1.msra.mxu0 0.0
  %1337 = vmatprep.subr.mxu0 0.0
  %1338 = vmatpush1.msra.mxu0 0.0
  %1339 = vmatprep.subr.mxu0 0.0
  %1340 = vmatpush1.msra.mxu0 0.0
  %1341 = vmatprep.subr.mxu0 0.0
  %1342 = vmatpush1.msra.mxu0 0.0
  %1343 = vmatprep.subr.mxu0 0.0
  %1344 = vmatpush1.msra.mxu0 0.0
  %1345 = vmatprep.subr.mxu0 0.0
  %1346 = vmatpush1.msra.mxu0 0.0
  %1347 = vmatprep.subr.mxu0 0.0
  %1348 = vmatpush1.msra.mxu0 0.0
  %1349 = vmatprep.subr.mxu0 0.0
  %1350 = vmatpush1.msra.mxu0 0.0
  %1351 = vmatprep.mubr.f32.mxu0 0.0
  %1352 = vmatmul.mubr.f32.gmra.mrb[0].mxu0 %v1285
  %v1353 = vpop.f32.mrb[0].mxu0
  %v1354 = vadd.f32 %v147, %v1353
  %v1355 = vpop.f32.mrb[0].mxu0
  %1356 = vdwg.mxu0
  %v1357 = vsel %vm225, %v1354, -inf
  %1358 = vmax.xlane.f32.xlu0 %v1357
  %v1359 = vpop.xlane.xlu0 %1358
  %v1360 = vsub.f32 %v1354, %v1359
  %v1361 = vmul.f32 %v1360, 1.442695
  %v1362 = vpow.pop %v1361
  %v1363 = vsel %vm225, %v1362, 0.0
  %1364 = vadd.xlane.f32.xlu0 %v1363
  %v1365 = vpop.xlane.xlu0 %1364
  %v1366 = vlog2.pop %v1365
  %v1367 = vmul.f32 %v1366, 0.6931472
  %v1368 = vadd.f32 %v1359, %v1367
  %v1369 = vsub.f32 %v1354, %v1368
  %1370 = vmatprep.subr.mxu0 0.0
  %1371 = vmatpush1.msra.mxu0 %v25
  %1372 = vmatprep.subr.mxu0 0.0
  %1373 = vmatpush1.msra.mxu0 %v26
  %1374 = vmatprep.subr.mxu0 0.0
  %1375 = vmatpush1.msra.mxu0 %v27
  %1376 = vmatprep.subr.mxu0 0.0
  %1377 = vmatpush1.msra.mxu0 %v28
  %1378 = vmatprep.subr.mxu0 0.0
  %1379 = vmatpush1.msra.mxu0 0.0
  %1380 = vmatprep.subr.mxu0 0.0
  %1381 = vmatpush1.msra.mxu0 0.0
  %1382 = vmatprep.subr.mxu0 0.0
  %1383 = vmatpush1.msra.mxu0 0.0
  %1384 = vmatprep.subr.mxu0 0.0
  %1385 = vmatpush1.msra.mxu0 0.0
  %1386 = vmatprep.subr.mxu0 0.0
  %1387 = vmatpush1.msra.mxu0 0.0
  %1388 = vmatprep.subr.mxu0 0.0
  %1389 = vmatpush1.msra.mxu0 0.0
  %1390 = vmatprep.subr.mxu0 0.0
  %1391 = vmatpush1.msra.mxu0 0.0
  %1392 = vmatprep.subr.mxu0 0.0
  %1393 = vmatpush1.msra.mxu0 0.0
  %1394 = vmatprep.subr.mxu0 0.0
  %1395 = vmatpush1.msra.mxu0 0.0
  %1396 = vmatprep.subr.mxu0 0.0
  %1397 = vmatpush1.msra.mxu0 0.0
  %1398 = vmatprep.subr.mxu0 0.0
  %1399 = vmatpush1.msra.mxu0 0.0
  %1400 = vmatprep.subr.mxu0 0.0
  %1401 = vmatpush1.msra.mxu0 0.0
  %1402 = vmatprep.subr.mxu0 0.0
  %1403 = vmatpush1.msra.mxu0 0.0
  %1404 = vmatprep.subr.mxu0 0.0
  %1405 = vmatpush1.msra.mxu0 0.0
  %1406 = vmatprep.subr.mxu0 0.0
  %1407 = vmatpush1.msra.mxu0 0.0
  %1408 = vmatprep.subr.mxu0 0.0
  %1409 = vmatpush1.msra.mxu0 0.0
  %1410 = vmatprep.subr.mxu0 0.0
  %1411 = vmatpush1.msra.mxu0 0.0
  %1412 = vmatprep.subr.mxu0 0.0
  %1413 = vmatpush1.msra.mxu0 0.0
  %1414 = vmatprep.subr.mxu0 0.0
  %1415 = vmatpush1.msra.mxu0 0.0
  %1416 = vmatprep.subr.mxu0 0.0
  %1417 = vmatpush1.msra.mxu0 0.0
  %1418 = vmatprep.subr.mxu0 0.0
  %1419 = vmatpush1.msra.mxu0 0.0
  %1420 = vmatprep.subr.mxu0 0.0
  %1421 = vmatpush1.msra.mxu0 0.0
  %1422 = vmatprep.subr.mxu0 0.0
  %1423 = vmatpush1.msra.mxu0 0.0
  %1424 = vmatprep.subr.mxu0 0.0
  %1425 = vmatpush1.msra.mxu0 0.0
  %1426 = vmatprep.subr.mxu0 0.0
  %1427 = vmatpush1.msra.mxu0 0.0
  %1428 = vmatprep.subr.mxu0 0.0
  %1429 = vmatpush1.msra.mxu0 0.0
  %1430 = vmatprep.subr.mxu0 0.0
  %1431 = vmatpush1.msra.mxu0 0.0
  %1432 = vmatprep.subr.mxu0 0.0
  %1433 = vmatpush1.msra.mxu0 0.0
  %1434 = vmatprep.mubr.f32.mxu0 0.0
  %1435 = vmatmul.mubr.f32.gmra.mrb[0].mxu0 %v1285
  %v1436 = vpop.f32.mrb[0].mxu0
  %v1437 = vadd.f32 0.0, %v1436
  %v1438 = vpop.f32.mrb[0].mxu0
  %1439 = vdwg.mxu0
  %v1440 = vadd.f32 %v116, %v1437
  %v1441 = vxor.u32 %v1440, 2147483648
  %v1442 = vmul.f32 %v1441, 1.442695
  %v1443 = vpow.pop %v1442
  %v1444 = vadd.f32 %v1443, 1.0
  %v1445 = vrcp.pop %v1444
  %v1446 = vmul.f32 1.0, %v1445
  %v1447 = vadd.f32 %v1437, %v317
  %1449 = vrot.lane.b32.xlu0 %v1447, 64
  %v1450 = vpop.permute.xlu0 %1449
  %v1452 = vmul.f32 %v1446, %v1450
  %1454 = vrot.lane.b32.xlu0 %v1452, 64
  %v1455 = vpop.permute.xlu0 %1454
  %v1457 = vadd.f32 %v116, %v1455
  %v1458 = vtanh.pop %v1457
  %v1459 = vsub.f32 %v1281, %v1458
  %1461 = vrot.lane.b32.xlu0 %v1459, 96
  %v1462 = vpop.permute.xlu0 %1461
  %v1464 = vmul.f32 %v1446, %v1462
  %1466 = vrot.lane.b32.xlu0 %v1464, 32
  %v1467 = vpop.permute.xlu0 %1466
  %v1469 = vadd.f32 %v1458, %v1467
  %1471 = vrot.lane.b32.xlu0 %v1469, 64
  %v1472 = vpop.permute.xlu0 %1471
  %v1473 = vsel %vm152, %v1472, 0
  %1475 = vmatprep.subr.mxu0 0.0
  %1476 = vmatpush1.msra.mxu0 %v29
  %1477 = vmatprep.subr.mxu0 0.0
  %1478 = vmatpush1.msra.mxu0 %v30
  %1479 = vmatprep.subr.mxu0 0.0
  %1480 = vmatpush1.msra.mxu0 %v31
  %1481 = vmatprep.subr.mxu0 0.0
  %1482 = vmatpush1.msra.mxu0 %v32
  %1483 = vmatprep.subr.mxu0 0.0
  %1484 = vmatpush1.msra.mxu0 0.0
  %1485 = vmatprep.subr.mxu0 0.0
  %1486 = vmatpush1.msra.mxu0 0.0
  %1487 = vmatprep.subr.mxu0 0.0
  %1488 = vmatpush1.msra.mxu0 0.0
  %1489 = vmatprep.subr.mxu0 0.0
  %1490 = vmatpush1.msra.mxu0 0.0
  %1491 = vmatprep.subr.mxu0 0.0
  %1492 = vmatpush1.msra.mxu0 0.0
  %1493 = vmatprep.subr.mxu0 0.0
  %1494 = vmatpush1.msra.mxu0 0.0
  %1495 = vmatprep.subr.mxu0 0.0
  %1496 = vmatpush1.msra.mxu0 0.0
  %1497 = vmatprep.subr.mxu0 0.0
  %1498 = vmatpush1.msra.mxu0 0.0
  %1499 = vmatprep.subr.mxu0 0.0
  %1500 = vmatpush1.msra.mxu0 0.0
  %1501 = vmatprep.subr.mxu0 0.0
  %1502 = vmatpush1.msra.mxu0 0.0
  %1503 = vmatprep.subr.mxu0 0.0
  %1504 = vmatpush1.msra.mxu0 0.0
  %1505 = vmatprep.subr.mxu0 0.0
  %1506 = vmatpush1.msra.mxu0 0.0
  %1507 = vmatprep.subr.mxu0 0.0
  %1508 = vmatpush1.msra.mxu0 0.0
  %1509 = vmatprep.subr.mxu0 0.0
  %1510 = vmatpush1.msra.mxu0 0.0
  %1511 = vmatprep.subr.mxu0 0.0
  %1512 = vmatpush1.msra.mxu0 0.0
  %1513 = vmatprep.subr.mxu0 0.0
  %1514 = vmatpush1.msra.mxu0 0.0
  %1515 = vmatprep.subr.mxu0 0.0
  %1516 = vmatpush1.msra.mxu0 0.0
  %1517 = vmatprep.subr.mxu0 0.0
  %1518 = vmatpush1.msra.mxu0 0.0
  %1519 = vmatprep.subr.mxu0 0.0
  %1520 = vmatpush1.msra.mxu0 0.0
  %1521 = vmatprep.subr.mxu0 0.0
  %1522 = vmatpush1.msra.mxu0 0.0
  %1523 = vmatprep.subr.mxu0 0.0
  %1524 = vmatpush1.msra.mxu0 0.0
  %1525 = vmatprep.subr.mxu0 0.0
  %1526 = vmatpush1.msra.mxu0 0.0
  %1527 = vmatprep.subr.mxu0 0.0
  %1528 = vmatpush1.msra.mxu0 0.0
  %1529 = vmatprep.subr.mxu0 0.0
  %1530 = vmatpush1.msra.mxu0 0.0
  %1531 = vmatprep.subr.mxu0 0.0
  %1532 = vmatpush1.msra.mxu0 0.0
  %1533 = vmatprep.subr.mxu0 0.0
  %1534 = vmatpush1.msra.mxu0 0.0
  %1535 = vmatprep.subr.mxu0 0.0
  %1536 = vmatpush1.msra.mxu0 0.0
  %1537 = vmatprep.subr.mxu0 0.0
  %1538 = vmatpush1.msra.mxu0 0.0
  %1539 = vmatprep.mubr.f32.mxu0 0.0
  %1540 = vmatmul.mubr.f32.gmra.mrb[0].mxu0 %v1473
  %v1541 = vpop.f32.mrb[0].mxu0
  %v1542 = vadd.f32 %v147, %v1541
  %v1543 = vpop.f32.mrb[0].mxu0
  %1544 = vdwg.mxu0
  %v1545 = vsel %vm225, %v1542, -inf
  %1546 = vmax.xlane.f32.xlu0 %v1545
  %v1547 = vpop.xlane.xlu0 %1546
  %v1548 = vsub.f32 %v1542, %v1547
  %v1549 = vmul.f32 %v1548, 1.442695
  %v1550 = vpow.pop %v1549
  %v1551 = vsel %vm225, %v1550, 0.0
  %1552 = vadd.xlane.f32.xlu0 %v1551
  %v1553 = vpop.xlane.xlu0 %1552
  %v1554 = vlog2.pop %v1553
  %v1555 = vmul.f32 %v1554, 0.6931472
  %v1556 = vadd.f32 %v1547, %v1555
  %v1557 = vsub.f32 %v1542, %v1556
  %1559 = vrot.lane.b32.xlu0 %v429, 16
  %v1560 = vpop.permute.xlu0 %1559
  %1563 = vrot.lane.b32.xlu0 %v617, 32
  %v1564 = vpop.permute.xlu0 %1563
  %1567 = vrot.lane.b32.xlu0 %v805, 48
  %v1568 = vpop.permute.xlu0 %1567
  %1571 = vrot.lane.b32.xlu0 %v993, 64
  %v1572 = vpop.permute.xlu0 %1571
  %1575 = vrot.lane.b32.xlu0 %v1181, 80
  %v1576 = vpop.permute.xlu0 %1575
  %1579 = vrot.lane.b32.xlu0 %v1369, 96
  %v1580 = vpop.permute.xlu0 %1579
  %1583 = vrot.lane.b32.xlu0 %v1557, 112
  %v1584 = vpop.permute.xlu0 %1583
  %v1586 = vsel %vm36, %v238, %v1560
  %v1587 = vsel %vm152, %v1586, %v1564
  %vm1588 = vcmask 392192
  %v1589 = vsel %vm1588, %v1587, %v1568
  %vm1590 = vcmask 523264
  %v1591 = vsel %vm1590, %v1589, %v1572
  %vm1592 = vcmask 654336
  %v1593 = vsel %vm1592, %v1591, %v1576
  %vm1594 = vcmask 785408
  %v1595 = vsel %vm1594, %v1593, %v1580
  %vm1596 = vcmask 916480
  %v1597 = vsel %vm1596, %v1595, %v1584
  %1598 = vst [vmem:[%s6] sm:$0x3] %v1597
  // Predicated region
  $region26: #{decoder_forward.1} parent=0 // pred_check
    _
  $region27: #{decoder_forward.1} parent=0 // pred_check_branch
    %1600 = sbr.rel (0) target = $region29
  $region28: #{decoder_forward.1} parent=0 // pred_region
    _
  $region29: #{decoder_forward.1} parent=0 // pred_fallthru
    _
  // Predicated region
  $region30: #{decoder_forward.1} parent=0 // pred_check
    _
  $region31: #{decoder_forward.1} parent=0 // pred_check_branch
    %1602 = sbr.rel (0) target = $region33
  $region32: #{decoder_forward.1} parent=0 // pred_region
    _
  $region33: #{decoder_forward.1} parent=0 // pred_fallthru
    _

</llo_original>
